<compile_context>
chip_gen: v6e
topology: v6e:2x2x1
jax: 0.10.0
libtpu: 0.0.40
codegen_flags: <defaults>
</compile_context>

<pallas_src>
import functools

import jax
import jax.numpy as jnp
from jax import lax
from jax.experimental import pallas as pl
from jax.experimental.pallas import tpu as pltpu


def _round_up(x, m):
    return ((x + m - 1) // m) * m


# ----------------------------------------------------------------------------
# Gate column layout inside the packed (.., Wg) GRU weight slabs.
# Primary layout [r|z|n] at offsets (0, S, 2S).  When padding lanes allow, the
# z / n gate columns are duplicated at the offsets the in-kernel lane rotation
# would read from under either rotation convention (direction-proof extraction).
# ----------------------------------------------------------------------------
def _gate_layout(H, S, Wg):
    places = {0: [0], 1: [S], 2: [2 * S]}
    z_dup = (Wg - S) % Wg
    n_dup = (Wg - 2 * S) % Wg
    if z_dup >= 2 * S + H and z_dup + H <= Wg:
        places[1].append(z_dup)
    if n_dup != 2 * S and n_dup >= 2 * S + H and n_dup + H <= Wg:
        places[2].append(n_dup)
    return places


# ----------------------------------------------------------------------------
# Pallas kernel: whole sequence in one invocation.
# ----------------------------------------------------------------------------
def _policy_kernel(
    obs_ref,        # (T*Bp, D)    time-major rows, TRUE feature width
    h0_ref,         # (Bp, Hp)
    w_i_ref,        # (Dp, Wg)     gate-packed input weights
    w_h_ref,        # (Hp, Wg)     gate-packed hidden weights
    b_gru_ref,      # (2, Wg)      rows: b_i, b_h (gate-packed)
    w_mlp_ref,      # (3, Hp, Hp)  stacked w1, w2, w3
    w4_ref,         # (Hp, Ap)
    b_mlp_ref,      # (4, Np)      rows: b1, b2, b3, b4 (zero-padded)
    mean_ref,       # (T*Bp, Ap)   lane-dense output slab
    h_out_ref,      # (Bp, Hp)
    xp_scr,         # VMEM (T*Bp, Dp)  on-chip feature padding
    gx_scr,         # VMEM (T*Bp, Wg)  x@W_i + b_i  (all steps)
    gxn_scr,        # VMEM (T*Bp, Wg)  same, pre-rotated for the n gate
    hs_scr,         # VMEM (T*Bp, Hp)  per-step hidden states
    *, T, Bp, D, Hp, Ap, S, Wg, action_scale, unroll,
):
    shift_z = (Wg - S) % Wg        # brings z-gate lanes to lane 0
    shift_n = (Wg - 2 * S) % Wg    # brings n-gate lanes to lane 0

    # ---- input projection: hoisted off the serial recurrence (review item 1) ----
    xp_scr[...] = jnp.zeros(xp_scr.shape, xp_scr.dtype)
    xp_scr[:, 0:D] = obs_ref[...]                      # pad D -> Dp on-chip
    gx = (jnp.dot(xp_scr[...], w_i_ref[...], preferred_element_type=jnp.float32)
          + b_gru_ref[0:1, :])                         # b_i folded in once
    gx_scr[...] = gx
    gxn_scr[...] = pltpu.roll(gx, shift_n, axis=1)     # n-gate x-projection, pre-aligned

    w_h = w_h_ref[...]
    b_h = jnp.broadcast_to(b_gru_ref[1:2, :], (Bp, Wg))   # hoisted broadcast (review item 2)

    # ---- sequential GRU recurrence (PyTorch gate math: r, z, n) ----
    # Per step: ONE 128-wide MXU tile (gate-compacted W_h), 2 EUP sigmoids +
    # 1 tanh, and a couple of XLU lane rotations.
    # TODO(synk): W_h could be kept MXU-resident across steps via
    # pltpu.matmul_push_rhs/acc_lhs/pop; relying on Mosaic hoisting for now.
    def step(t, h):
        row = pl.multiple_of(t * Bp, Bp)
        gx_t = gx_scr[pl.ds(row, Bp), :]               # (Bp, Wg)
        gxn_t = gxn_scr[pl.ds(row, Bp), :]             # (Bp, Wg), n-gate aligned to lane 0
        gh = jnp.dot(h, w_h, preferred_element_type=jnp.float32) + b_h
        s = gx_t + gh
        r = jax.nn.sigmoid(s)                                   # r valid at lanes [0, H)
        z = jax.nn.sigmoid(pltpu.roll(s, shift_z, axis=1))      # z valid at lanes [0, H)
        n = jnp.tanh(gxn_t + r * pltpu.roll(gh, shift_n, axis=1))
        h_new = (1.0 - z[:, :Hp]) * n[:, :Hp] + z[:, :Hp] * h   # lanes >= H are dead (zero weight rows)
        hs_scr[pl.ds(row, Bp), :] = h_new
        return h_new

    h_last = lax.fori_loop(0, T, step, h0_ref[...], unroll=unroll)
    h_out_ref[...] = h_last

    # ---- actor_mean MLP head, batched over all T*Bp GRU outputs ----
    y = hs_scr[...]                                    # (T*Bp, Hp), lane-dense
    for i in range(3):
        y = jax.nn.relu(
            jnp.dot(y, w_mlp_ref[i], preferred_element_type=jnp.float32)
            + b_mlp_ref[i:i + 1, :Hp])
    m = jnp.tanh(
        jnp.dot(y, w4_ref[...], preferred_element_type=jnp.float32)
        + b_mlp_ref[3:4, :Ap]) * action_scale
    mean_ref[...] = m


# ----------------------------------------------------------------------------
# Param packing: 20 small tensors -> 6 padded, lane-aligned, gate-compacted refs.
# ----------------------------------------------------------------------------
def pack_params(params, obs_dim):
    H = params["w_hr"].shape[0]
    A = params["w4"].shape[1]
    Dp = _round_up(obs_dim, 128)
    Hp = _round_up(H, 128)
    Ap = _round_up(A, 128)
    Np = max(Hp, Ap)
    S = H if 3 * H <= 128 else Hp          # gate stride: compact when 3H fits one lane tile
    Wg = _round_up(3 * S, 128)
    places = _gate_layout(H, S, Wg)

    def pack_gates(names, rows, rows_pad):
        out = jnp.zeros((rows_pad, Wg), jnp.float32)
        for g, name in enumerate(names):
            w = jnp.asarray(params[name], jnp.float32).reshape(rows, H)
            for off in places[g]:
                out = out.at[:rows, off:off + H].set(w)
        return out

    w_i = pack_gates(("w_ir", "w_iz", "w_in"), obs_dim, Dp)
    w_h = pack_gates(("w_hr", "w_hz", "w_hn"), H, Hp)
    b_i = pack_gates(("b_ir", "b_iz", "b_in"), 1, 1)
    b_h = pack_gates(("b_hr", "b_hz", "b_hn"), 1, 1)
    b_gru = jnp.concatenate([b_i, b_h], axis=0)                         # (2, Wg)

    def pad(a, r, c):
        a = jnp.asarray(a, jnp.float32)
        return jnp.pad(a, ((0, r - a.shape[0]), (0, c - a.shape[1])))

    w_mlp = jnp.stack([pad(params[k], Hp, Hp) for k in ("w1", "w2", "w3")], axis=0)
    w4 = pad(params["w4"], Hp, Ap)
    b_mlp = jnp.concatenate(
        [pad(params["b1"], 1, Np), pad(params["b2"], 1, Np),
         pad(params["b3"], 1, Np), pad(params["b4"], 1, Np)], axis=0)   # (4, Np)
    return dict(w_i=w_i, w_h=w_h, b_gru=b_gru, w_mlp=w_mlp, w4=w4, b_mlp=b_mlp,
                dims=(Dp, Hp, Ap, Np, S, Wg))


# ----------------------------------------------------------------------------
# Wrapper mirroring PolicyNetwork.forward. obs: (B, T, D) or (B, D).
# ----------------------------------------------------------------------------
def policy_forward(params, obs, hidden=None, *, action_scale=20.0):
    obs = jnp.asarray(obs, jnp.float32)
    if obs.ndim == 2:
        obs = obs[:, None, :]                       # unsqueeze(1)
    B, T, D = obs.shape
    H = params["w_hr"].shape[0]
    A = params["w4"].shape[1]

    packed = pack_params(params, D)
    Dp, Hp, Ap, Np, S, Wg = packed["dims"]
    Bp = _round_up(B, 8)

    if hidden is None:
        h0 = jnp.zeros((B, H), jnp.float32)         # init_hidden (num_layers=1)
    else:
        h0 = jnp.asarray(hidden, jnp.float32)[0]
    h0_p = jnp.zeros((Bp, Hp), jnp.float32).at[:B, :H].set(h0)

    # Time-major, batch padded to a sublane multiple; feature dim left UNPADDED
    # (padding to Dp happens on-chip, HBM traffic stays O(T*B*D)).
    obs_tm = jnp.transpose(obs, (1, 0, 2))                         # (T, B, D)
    obs2d = (jnp.zeros((T, Bp, D), jnp.float32)
             .at[:, :B, :].set(obs_tm).reshape(T * Bp, D))

    kernel = functools.partial(
        _policy_kernel, T=T, Bp=Bp, D=D, Hp=Hp, Ap=Ap, S=S, Wg=Wg,
        action_scale=float(action_scale), unroll=min(T, 8))

    def spec(shape):
        ndim = len(shape)
        return pl.BlockSpec(shape, lambda i, _n=ndim: (0,) * _n)

    mean_flat, h_last = pl.pallas_call(
        kernel,
        out_shape=(
            jax.ShapeDtypeStruct((T * Bp, Ap), jnp.float32),
            jax.ShapeDtypeStruct((Bp, Hp), jnp.float32),
        ),
        grid_spec=pltpu.PrefetchScalarGridSpec(
            num_scalar_prefetch=0,
            grid=(1,),
            in_specs=[
                spec((T * Bp, D)),        # obs, true feature width
                spec((Bp, Hp)),           # h0
                spec((Dp, Wg)),           # gate-packed W_i
                spec((Hp, Wg)),           # gate-packed W_h
                spec((2, Wg)),            # GRU biases
                spec((3, Hp, Hp)),        # MLP w1..w3
                spec((Hp, Ap)),           # MLP w4
                spec((4, Np)),            # MLP biases
            ],
            out_specs=[
                spec((T * Bp, Ap)),
                spec((Bp, Hp)),
            ],
            scratch_shapes=[
                pltpu.VMEM((T * Bp, Dp), jnp.float32),   # padded obs
                pltpu.VMEM((T * Bp, Wg), jnp.float32),   # gx (r/z aligned)
                pltpu.VMEM((T * Bp, Wg), jnp.float32),   # gx (n aligned)
                pltpu.VMEM((T * Bp, Hp), jnp.float32),   # hidden states
            ],
        ),
        compiler_params=pltpu.CompilerParams(
            dimension_semantics=("arbitrary",),
            vmem_limit_bytes=32 * 1024 * 1024,
        ),
    )(obs2d, h0_p, packed["w_i"], packed["w_h"], packed["b_gru"],
      packed["w_mlp"], packed["w4"], packed["b_mlp"])

    mean = mean_flat.reshape(T, Bp, Ap)[:, :B, :A]
    mean = jnp.transpose(mean, (1, 0, 2))           # back to (B, T, A)
    std = jnp.broadcast_to(jnp.exp(params["log_std"]), mean.shape)
    new_hidden = h_last[:B, :H][None, :, :]         # (1, B, H)
    return mean, std, new_hidden


# ----------------------------------------------------------------------------
# Deterministic parameter init (shapes match the PyTorch module, synthetic values)
# ----------------------------------------------------------------------------
def init_params(key, obs_dim, act_dim, hidden_size=32):
    H = hidden_size
    keys = jax.random.split(key, 32)
    ki = iter(keys)
    kg = 1.0 / jnp.sqrt(jnp.float32(H))

    def unif(k, shape, bound):
        return jax.random.uniform(k, shape, jnp.float32, -bound, bound)

    p = {}
    for name, shape in [("w_ir", (obs_dim, H)), ("w_iz", (obs_dim, H)), ("w_in", (obs_dim, H)),
                        ("w_hr", (H, H)), ("w_hz", (H, H)), ("w_hn", (H, H))]:
        p[name] = unif(next(ki), shape, kg)
    for name in ["b_ir", "b_iz", "b_in", "b_hr", "b_hz", "b_hn"]:
        p[name] = unif(next(ki), (1, H), kg)
    kl = 1.0 / jnp.sqrt(jnp.float32(H))
    p["w1"] = unif(next(ki), (H, H), kl); p["b1"] = unif(next(ki), (1, H), kl)
    p["w2"] = unif(next(ki), (H, H), kl); p["b2"] = unif(next(ki), (1, H), kl)
    p["w3"] = unif(next(ki), (H, H), kl); p["b3"] = unif(next(ki), (1, H), kl)
    p["w4"] = unif(next(ki), (H, act_dim), kl); p["b4"] = unif(next(ki), (1, act_dim), kl)
    p["log_std"] = jnp.zeros((act_dim,), jnp.float32)
    return p


# ----------------------------------------------------------------------------
# Pure-JAX reference (same math) for correctness check
# ----------------------------------------------------------------------------
def policy_forward_ref(params, obs, hidden=None, *, action_scale=20.0):
    obs = jnp.asarray(obs, jnp.float32)
    if obs.ndim == 2:
        obs = obs[:, None, :]
    B, T, D = obs.shape
    H = params["w_hr"].shape[0]
    h = jnp.zeros((B, H), jnp.float32) if hidden is None else hidden[0]
    means = []
    for t in range(T):
        x = obs[:, t, :]
        r = jax.nn.sigmoid(x @ params["w_ir"] + params["b_ir"] + h @ params["w_hr"] + params["b_hr"])
        z = jax.nn.sigmoid(x @ params["w_iz"] + params["b_iz"] + h @ params["w_hz"] + params["b_hz"])
        n = jnp.tanh(x @ params["w_in"] + params["b_in"] + r * (h @ params["w_hn"] + params["b_hn"]))
        h = (1.0 - z) * n + z * h
        y = jax.nn.relu(h @ params["w1"] + params["b1"])
        y = jax.nn.relu(y @ params["w2"] + params["b2"])
        y = jax.nn.relu(y @ params["w3"] + params["b3"])
        means.append(jnp.tanh(y @ params["w4"] + params["b4"]) * action_scale)
    mean = jnp.stack(means, axis=1)
    std = jnp.broadcast_to(jnp.exp(params["log_std"]), mean.shape)
    return mean, std, h[None, :, :]


if __name__ == "__main__":
    key = jax.random.PRNGKey(0)
    k_param, k_obs = jax.random.split(key)

    B, T, obs_dim, act_dim, H = 2, 8, 6, 3, 32
    params = init_params(k_param, obs_dim, act_dim, hidden_size=H)
    obs = jax.random.normal(k_obs, (B, T, obs_dim), jnp.float32)

    mean, std, new_hidden = policy_forward(params, obs)
    jax.block_until_ready((mean, std, new_hidden))

    mean_r, std_r, hid_r = policy_forward_ref(params, obs)
    assert mean.shape == (B, T, act_dim) and std.shape == (B, T, act_dim)
    assert new_hidden.shape == (1, B, H)
    assert jnp.allclose(mean, mean_r, atol=1e-4, rtol=1e-4)
    assert jnp.allclose(new_hidden, hid_r, atol=1e-4, rtol=1e-4)
    assert jnp.allclose(std, std_r)

    print("KERNEL_OK")
</pallas_src>

<mosaic_0001>
module attributes {stable_mosaic.version = 11 : i64} {
  func.func @_policy_kernel(%arg0: i32, %arg1: memref<64x6xf32, #tpu.memory_space<vmem>>, %arg2: memref<8x128xf32, #tpu.memory_space<vmem>>, %arg3: memref<128x128xf32, #tpu.memory_space<vmem>>, %arg4: memref<128x128xf32, #tpu.memory_space<vmem>>, %arg5: memref<2x128xf32, #tpu.memory_space<vmem>>, %arg6: memref<3x128x128xf32, #tpu.memory_space<vmem>>, %arg7: memref<128x128xf32, #tpu.memory_space<vmem>>, %arg8: memref<4x128xf32, #tpu.memory_space<vmem>>, %arg9: memref<64x128xf32, #tpu.memory_space<vmem>>, %arg10: memref<8x128xf32, #tpu.memory_space<vmem>>, %arg11: memref<64x128xf32, #tpu.memory_space<vmem>>, %arg12: memref<64x128xf32, #tpu.memory_space<vmem>>, %arg13: memref<64x128xf32, #tpu.memory_space<vmem>>, %arg14: memref<64x128xf32, #tpu.memory_space<vmem>>) attributes {dimension_semantics = [#tpu.dimension_semantics<arbitrary>], iteration_bounds = array<i64: 1>, scalar_prefetch = 0 : i64, scratch_operands = 4 : i64, tpu.core_type = #tpu.core_type<tc>, window_params = [{pipeline_mode = #tpu.pipeline_mode<synchronous>, transform_indices = @transform_0, window_bounds = array<i64: 64, 6>}, {pipeline_mode = #tpu.pipeline_mode<synchronous>, transform_indices = @transform_1, window_bounds = array<i64: 8, 128>}, {pipeline_mode = #tpu.pipeline_mode<synchronous>, transform_indices = @transform_2, window_bounds = array<i64: 128, 128>}, {pipeline_mode = #tpu.pipeline_mode<synchronous>, transform_indices = @transform_3, window_bounds = array<i64: 128, 128>}, {pipeline_mode = #tpu.pipeline_mode<synchronous>, transform_indices = @transform_4, window_bounds = array<i64: 2, 128>}, {pipeline_mode = #tpu.pipeline_mode<synchronous>, transform_indices = @transform_5, window_bounds = array<i64: 3, 128, 128>}, {pipeline_mode = #tpu.pipeline_mode<synchronous>, transform_indices = @transform_6, window_bounds = array<i64: 128, 128>}, {pipeline_mode = #tpu.pipeline_mode<synchronous>, transform_indices = @transform_7, window_bounds = array<i64: 4, 128>}, {pipeline_mode = #tpu.pipeline_mode<synchronous>, transform_indices = @transform_8, window_bounds = array<i64: 64, 128>}, {pipeline_mode = #tpu.pipeline_mode<synchronous>, transform_indices = @transform_9, window_bounds = array<i64: 8, 128>}]} {
    %cst = arith.constant 0.000000e+00 : f32
    %0 = vector.broadcast %cst : f32 to vector<64x128xf32>
    %c0 = arith.constant 0 : index
    %c0_0 = arith.constant 0 : index
    %1 = vector.load %arg11[%c0, %c0_0] : memref<64x128xf32, #tpu.memory_space<vmem>>, vector<64x128xf32>
    tpu.vector_store %arg11[%c0, %c0_0], %0 {strides = array<i32>} : memref<64x128xf32, #tpu.memory_space<vmem>>, vector<64x128xf32>,
    %c0_1 = arith.constant 0 : index
    %c0_2 = arith.constant 0 : index
    %2 = vector.load %arg1[%c0_1, %c0_2] : memref<64x6xf32, #tpu.memory_space<vmem>>, vector<64x6xf32>
    %c0_3 = arith.constant 0 : index
    %c0_4 = arith.constant 0 : index
    %3 = vector.load %arg11[%c0_3, %c0_4] : memref<64x128xf32, #tpu.memory_space<vmem>>, vector<64x6xf32>
    tpu.vector_store %arg11[%c0_3, %c0_4], %2 {strides = array<i32>} : memref<64x128xf32, #tpu.memory_space<vmem>>, vector<64x6xf32>,
    %c0_5 = arith.constant 0 : index
    %c0_6 = arith.constant 0 : index
    %4 = vector.load %arg11[%c0_5, %c0_6] : memref<64x128xf32, #tpu.memory_space<vmem>>, vector<64x128xf32>
    %c0_7 = arith.constant 0 : index
    %c0_8 = arith.constant 0 : index
    %5 = vector.load %arg3[%c0_7, %c0_8] : memref<128x128xf32, #tpu.memory_space<vmem>>, vector<128x128xf32>
    %cst_9 = arith.constant dense<0.000000e+00> : vector<64x128xf32>
    %6 = tpu.matmul %4, %5, %cst_9 {dimension_numbers = #tpu.dot_dimension_numbers<[1], [0], [0], [1], [0, 0, 1, 1], [], []>} : vector<64x128xf32>, vector<128x128xf32>, vector<64x128xf32> -> vector<64x128xf32>
    %c0_10 = arith.constant 0 : index
    %c0_11 = arith.constant 0 : index
    %7 = vector.load %arg5[%c0_10, %c0_11] : memref<2x128xf32, #tpu.memory_space<vmem>>, vector<1x128xf32>
    %8 = vector.broadcast %7 : vector<1x128xf32> to vector<64x128xf32>
    %9 = arith.addf %6, %8 : vector<64x128xf32>
    %c0_12 = arith.constant 0 : index
    %c0_13 = arith.constant 0 : index
    %10 = vector.load %arg12[%c0_12, %c0_13] : memref<64x128xf32, #tpu.memory_space<vmem>>, vector<64x128xf32>
    tpu.vector_store %arg12[%c0_12, %c0_13], %9 {strides = array<i32>} : memref<64x128xf32, #tpu.memory_space<vmem>>, vector<64x128xf32>,
    %c64_i32 = arith.constant 64 : i32
    %11 = tpu.dynamic_rotate %9 by %c64_i32 dim 1 : vector<64x128xf32>, i32 -> vector<64x128xf32>
    %c0_14 = arith.constant 0 : index
    %c0_15 = arith.constant 0 : index
    %12 = vector.load %arg13[%c0_14, %c0_15] : memref<64x128xf32, #tpu.memory_space<vmem>>, vector<64x128xf32>
    tpu.vector_store %arg13[%c0_14, %c0_15], %11 {strides = array<i32>} : memref<64x128xf32, #tpu.memory_space<vmem>>, vector<64x128xf32>,
    %c0_16 = arith.constant 0 : index
    %c0_17 = arith.constant 0 : index
    %13 = vector.load %arg4[%c0_16, %c0_17] : memref<128x128xf32, #tpu.memory_space<vmem>>, vector<128x128xf32>
    %c1 = arith.constant 1 : index
    %c0_18 = arith.constant 0 : index
    %14 = vector.load %arg5[%c1, %c0_18] : memref<2x128xf32, #tpu.memory_space<vmem>>, vector<1x128xf32>
    %15 = vector.shape_cast %14 : vector<1x128xf32> to vector<1x128xf32>
    %16 = vector.broadcast %15 : vector<1x128xf32> to vector<8x128xf32>
    %c0_19 = arith.constant 0 : index
    %c0_20 = arith.constant 0 : index
    %17 = vector.load %arg2[%c0_19, %c0_20] : memref<8x128xf32, #tpu.memory_space<vmem>>, vector<8x128xf32>
    %c0_i32 = arith.constant 0 : i32
    %c8_i32 = arith.constant 8 : i32
    %18 = arith.muli %c0_i32, %c8_i32 : i32
    %19 = tpu.assume_multiple %18, 8 : i32
    %20 = arith.index_cast %19 : i32 to index
    %c0_21 = arith.constant 0 : index
    %21 = vector.load %arg12[%20, %c0_21] : memref<64x128xf32, #tpu.memory_space<vmem>>, vector<8x128xf32>
    %22 = arith.index_cast %19 : i32 to index
    %c0_22 = arith.constant 0 : index
    %23 = vector.load %arg13[%22, %c0_22] : memref<64x128xf32, #tpu.memory_space<vmem>>, vector<8x128xf32>
    %cst_23 = arith.constant dense<0.000000e+00> : vector<8x128xf32>
    %24 = tpu.matmul %17, %13, %cst_23 {dimension_numbers = #tpu.dot_dimension_numbers<[1], [0], [0], [1], [0, 0, 1, 1], [], []>} : vector<8x128xf32>, vector<128x128xf32>, vector<8x128xf32> -> vector<8x128xf32>
    %25 = arith.addf %24, %16 : vector<8x128xf32>
    %26 = arith.addf %21, %25 : vector<8x128xf32>
    %27 = arith.negf %26 : vector<8x128xf32>
    %28 = math.exp %27 : vector<8x128xf32>
    %cst_24 = arith.constant 1.000000e+00 : f32
    %29 = vector.broadcast %cst_24 : f32 to vector<8x128xf32>
    %30 = arith.addf %29, %28 : vector<8x128xf32>
    %31 = arith.divf %29, %30 : vector<8x128xf32>
    %c96_i32 = arith.constant 96 : i32
    %32 = tpu.dynamic_rotate %26 by %c96_i32 dim 1 : vector<8x128xf32>, i32 -> vector<8x128xf32>
    %33 = arith.negf %32 : vector<8x128xf32>
    %34 = math.exp %33 : vector<8x128xf32>
    %cst_25 = arith.constant 1.000000e+00 : f32
    %35 = vector.broadcast %cst_25 : f32 to vector<8x128xf32>
    %36 = arith.addf %35, %34 : vector<8x128xf32>
    %37 = arith.divf %35, %36 : vector<8x128xf32>
    %c64_i32_26 = arith.constant 64 : i32
    %38 = tpu.dynamic_rotate %25 by %c64_i32_26 dim 1 : vector<8x128xf32>, i32 -> vector<8x128xf32>
    %39 = arith.mulf %31, %38 : vector<8x128xf32>
    %40 = arith.addf %23, %39 : vector<8x128xf32>
    %41 = math.tanh %40 : vector<8x128xf32>
    %cst_27 = arith.constant 1.000000e+00 : f32
    %42 = vector.broadcast %cst_27 : f32 to vector<8x128xf32>
    %43 = arith.subf %42, %37 : vector<8x128xf32>
    %44 = arith.mulf %43, %41 : vector<8x128xf32>
    %45 = arith.mulf %37, %17 : vector<8x128xf32>
    %46 = arith.addf %44, %45 : vector<8x128xf32>
    %47 = arith.index_cast %19 : i32 to index
    %c0_28 = arith.constant 0 : index
    %48 = vector.load %arg14[%47, %c0_28] : memref<64x128xf32, #tpu.memory_space<vmem>>, vector<8x128xf32>
    tpu.vector_store %arg14[%47, %c0_28], %46 {strides = array<i32>} : memref<64x128xf32, #tpu.memory_space<vmem>>, vector<8x128xf32>,
    %c1_i32 = arith.constant 1 : i32
    %c8_i32_29 = arith.constant 8 : i32
    %49 = arith.muli %c1_i32, %c8_i32_29 : i32
    %50 = tpu.assume_multiple %49, 8 : i32
    %51 = arith.index_cast %50 : i32 to index
    %c0_30 = arith.constant 0 : index
    %52 = vector.load %arg12[%51, %c0_30] : memref<64x128xf32, #tpu.memory_space<vmem>>, vector<8x128xf32>
    %53 = arith.index_cast %50 : i32 to index
    %c0_31 = arith.constant 0 : index
    %54 = vector.load %arg13[%53, %c0_31] : memref<64x128xf32, #tpu.memory_space<vmem>>, vector<8x128xf32>
    %cst_32 = arith.constant dense<0.000000e+00> : vector<8x128xf32>
    %55 = tpu.matmul %46, %13, %cst_32 {dimension_numbers = #tpu.dot_dimension_numbers<[1], [0], [0], [1], [0, 0, 1, 1], [], []>} : vector<8x128xf32>, vector<128x128xf32>, vector<8x128xf32> -> vector<8x128xf32>
    %56 = arith.addf %55, %16 : vector<8x128xf32>
    %57 = arith.addf %52, %56 : vector<8x128xf32>
    %58 = arith.negf %57 : vector<8x128xf32>
    %59 = math.exp %58 : vector<8x128xf32>
    %cst_33 = arith.constant 1.000000e+00 : f32
    %60 = vector.broadcast %cst_33 : f32 to vector<8x128xf32>
    %61 = arith.addf %60, %59 : vector<8x128xf32>
    %62 = arith.divf %60, %61 : vector<8x128xf32>
    %c96_i32_34 = arith.constant 96 : i32
    %63 = tpu.dynamic_rotate %57 by %c96_i32_34 dim 1 : vector<8x128xf32>, i32 -> vector<8x128xf32>
    %64 = arith.negf %63 : vector<8x128xf32>
    %65 = math.exp %64 : vector<8x128xf32>
    %cst_35 = arith.constant 1.000000e+00 : f32
    %66 = vector.broadcast %cst_35 : f32 to vector<8x128xf32>
    %67 = arith.addf %66, %65 : vector<8x128xf32>
    %68 = arith.divf %66, %67 : vector<8x128xf32>
    %c64_i32_36 = arith.constant 64 : i32
    %69 = tpu.dynamic_rotate %56 by %c64_i32_36 dim 1 : vector<8x128xf32>, i32 -> vector<8x128xf32>
    %70 = arith.mulf %62, %69 : vector<8x128xf32>
    %71 = arith.addf %54, %70 : vector<8x128xf32>
    %72 = math.tanh %71 : vector<8x128xf32>
    %cst_37 = arith.constant 1.000000e+00 : f32
    %73 = vector.broadcast %cst_37 : f32 to vector<8x128xf32>
    %74 = arith.subf %73, %68 : vector<8x128xf32>
    %75 = arith.mulf %74, %72 : vector<8x128xf32>
    %76 = arith.mulf %68, %46 : vector<8x128xf32>
    %77 = arith.addf %75, %76 : vector<8x128xf32>
    %78 = arith.index_cast %50 : i32 to index
    %c0_38 = arith.constant 0 : index
    %79 = vector.load %arg14[%78, %c0_38] : memref<64x128xf32, #tpu.memory_space<vmem>>, vector<8x128xf32>
    tpu.vector_store %arg14[%78, %c0_38], %77 {strides = array<i32>} : memref<64x128xf32, #tpu.memory_space<vmem>>, vector<8x128xf32>,
    %c2_i32 = arith.constant 2 : i32
    %c8_i32_39 = arith.constant 8 : i32
    %80 = arith.muli %c2_i32, %c8_i32_39 : i32
    %81 = tpu.assume_multiple %80, 8 : i32
    %82 = arith.index_cast %81 : i32 to index
    %c0_40 = arith.constant 0 : index
    %83 = vector.load %arg12[%82, %c0_40] : memref<64x128xf32, #tpu.memory_space<vmem>>, vector<8x128xf32>
    %84 = arith.index_cast %81 : i32 to index
    %c0_41 = arith.constant 0 : index
    %85 = vector.load %arg13[%84, %c0_41] : memref<64x128xf32, #tpu.memory_space<vmem>>, vector<8x128xf32>
    %cst_42 = arith.constant dense<0.000000e+00> : vector<8x128xf32>
    %86 = tpu.matmul %77, %13, %cst_42 {dimension_numbers = #tpu.dot_dimension_numbers<[1], [0], [0], [1], [0, 0, 1, 1], [], []>} : vector<8x128xf32>, vector<128x128xf32>, vector<8x128xf32> -> vector<8x128xf32>
    %87 = arith.addf %86, %16 : vector<8x128xf32>
    %88 = arith.addf %83, %87 : vector<8x128xf32>
    %89 = arith.negf %88 : vector<8x128xf32>
    %90 = math.exp %89 : vector<8x128xf32>
    %cst_43 = arith.constant 1.000000e+00 : f32
    %91 = vector.broadcast %cst_43 : f32 to vector<8x128xf32>
    %92 = arith.addf %91, %90 : vector<8x128xf32>
    %93 = arith.divf %91, %92 : vector<8x128xf32>
    %c96_i32_44 = arith.constant 96 : i32
    %94 = tpu.dynamic_rotate %88 by %c96_i32_44 dim 1 : vector<8x128xf32>, i32 -> vector<8x128xf32>
    %95 = arith.negf %94 : vector<8x128xf32>
    %96 = math.exp %95 : vector<8x128xf32>
    %cst_45 = arith.constant 1.000000e+00 : f32
    %97 = vector.broadcast %cst_45 : f32 to vector<8x128xf32>
    %98 = arith.addf %97, %96 : vector<8x128xf32>
    %99 = arith.divf %97, %98 : vector<8x128xf32>
    %c64_i32_46 = arith.constant 64 : i32
    %100 = tpu.dynamic_rotate %87 by %c64_i32_46 dim 1 : vector<8x128xf32>, i32 -> vector<8x128xf32>
    %101 = arith.mulf %93, %100 : vector<8x128xf32>
    %102 = arith.addf %85, %101 : vector<8x128xf32>
    %103 = math.tanh %102 : vector<8x128xf32>
    %cst_47 = arith.constant 1.000000e+00 : f32
    %104 = vector.broadcast %cst_47 : f32 to vector<8x128xf32>
    %105 = arith.subf %104, %99 : vector<8x128xf32>
    %106 = arith.mulf %105, %103 : vector<8x128xf32>
    %107 = arith.mulf %99, %77 : vector<8x128xf32>
    %108 = arith.addf %106, %107 : vector<8x128xf32>
    %109 = arith.index_cast %81 : i32 to index
    %c0_48 = arith.constant 0 : index
    %110 = vector.load %arg14[%109, %c0_48] : memref<64x128xf32, #tpu.memory_space<vmem>>, vector<8x128xf32>
    tpu.vector_store %arg14[%109, %c0_48], %108 {strides = array<i32>} : memref<64x128xf32, #tpu.memory_space<vmem>>, vector<8x128xf32>,
    %c3_i32 = arith.constant 3 : i32
    %c8_i32_49 = arith.constant 8 : i32
    %111 = arith.muli %c3_i32, %c8_i32_49 : i32
    %112 = tpu.assume_multiple %111, 8 : i32
    %113 = arith.index_cast %112 : i32 to index
    %c0_50 = arith.constant 0 : index
    %114 = vector.load %arg12[%113, %c0_50] : memref<64x128xf32, #tpu.memory_space<vmem>>, vector<8x128xf32>
    %115 = arith.index_cast %112 : i32 to index
    %c0_51 = arith.constant 0 : index
    %116 = vector.load %arg13[%115, %c0_51] : memref<64x128xf32, #tpu.memory_space<vmem>>, vector<8x128xf32>
    %cst_52 = arith.constant dense<0.000000e+00> : vector<8x128xf32>
    %117 = tpu.matmul %108, %13, %cst_52 {dimension_numbers = #tpu.dot_dimension_numbers<[1], [0], [0], [1], [0, 0, 1, 1], [], []>} : vector<8x128xf32>, vector<128x128xf32>, vector<8x128xf32> -> vector<8x128xf32>
    %118 = arith.addf %117, %16 : vector<8x128xf32>
    %119 = arith.addf %114, %118 : vector<8x128xf32>
    %120 = arith.negf %119 : vector<8x128xf32>
    %121 = math.exp %120 : vector<8x128xf32>
    %cst_53 = arith.constant 1.000000e+00 : f32
    %122 = vector.broadcast %cst_53 : f32 to vector<8x128xf32>
    %123 = arith.addf %122, %121 : vector<8x128xf32>
    %124 = arith.divf %122, %123 : vector<8x128xf32>
    %c96_i32_54 = arith.constant 96 : i32
    %125 = tpu.dynamic_rotate %119 by %c96_i32_54 dim 1 : vector<8x128xf32>, i32 -> vector<8x128xf32>
    %126 = arith.negf %125 : vector<8x128xf32>
    %127 = math.exp %126 : vector<8x128xf32>
    %cst_55 = arith.constant 1.000000e+00 : f32
    %128 = vector.broadcast %cst_55 : f32 to vector<8x128xf32>
    %129 = arith.addf %128, %127 : vector<8x128xf32>
    %130 = arith.divf %128, %129 : vector<8x128xf32>
    %c64_i32_56 = arith.constant 64 : i32
    %131 = tpu.dynamic_rotate %118 by %c64_i32_56 dim 1 : vector<8x128xf32>, i32 -> vector<8x128xf32>
    %132 = arith.mulf %124, %131 : vector<8x128xf32>
    %133 = arith.addf %116, %132 : vector<8x128xf32>
    %134 = math.tanh %133 : vector<8x128xf32>
    %cst_57 = arith.constant 1.000000e+00 : f32
    %135 = vector.broadcast %cst_57 : f32 to vector<8x128xf32>
    %136 = arith.subf %135, %130 : vector<8x128xf32>
    %137 = arith.mulf %136, %134 : vector<8x128xf32>
    %138 = arith.mulf %130, %108 : vector<8x128xf32>
    %139 = arith.addf %137, %138 : vector<8x128xf32>
    %140 = arith.index_cast %112 : i32 to index
    %c0_58 = arith.constant 0 : index
    %141 = vector.load %arg14[%140, %c0_58] : memref<64x128xf32, #tpu.memory_space<vmem>>, vector<8x128xf32>
    tpu.vector_store %arg14[%140, %c0_58], %139 {strides = array<i32>} : memref<64x128xf32, #tpu.memory_space<vmem>>, vector<8x128xf32>,
    %c4_i32 = arith.constant 4 : i32
    %c8_i32_59 = arith.constant 8 : i32
    %142 = arith.muli %c4_i32, %c8_i32_59 : i32
    %143 = tpu.assume_multiple %142, 8 : i32
    %144 = arith.index_cast %143 : i32 to index
    %c0_60 = arith.constant 0 : index
    %145 = vector.load %arg12[%144, %c0_60] : memref<64x128xf32, #tpu.memory_space<vmem>>, vector<8x128xf32>
    %146 = arith.index_cast %143 : i32 to index
    %c0_61 = arith.constant 0 : index
    %147 = vector.load %arg13[%146, %c0_61] : memref<64x128xf32, #tpu.memory_space<vmem>>, vector<8x128xf32>
    %cst_62 = arith.constant dense<0.000000e+00> : vector<8x128xf32>
    %148 = tpu.matmul %139, %13, %cst_62 {dimension_numbers = #tpu.dot_dimension_numbers<[1], [0], [0], [1], [0, 0, 1, 1], [], []>} : vector<8x128xf32>, vector<128x128xf32>, vector<8x128xf32> -> vector<8x128xf32>
    %149 = arith.addf %148, %16 : vector<8x128xf32>
    %150 = arith.addf %145, %149 : vector<8x128xf32>
    %151 = arith.negf %150 : vector<8x128xf32>
    %152 = math.exp %151 : vector<8x128xf32>
    %cst_63 = arith.constant 1.000000e+00 : f32
    %153 = vector.broadcast %cst_63 : f32 to vector<8x128xf32>
    %154 = arith.addf %153, %152 : vector<8x128xf32>
    %155 = arith.divf %153, %154 : vector<8x128xf32>
    %c96_i32_64 = arith.constant 96 : i32
    %156 = tpu.dynamic_rotate %150 by %c96_i32_64 dim 1 : vector<8x128xf32>, i32 -> vector<8x128xf32>
    %157 = arith.negf %156 : vector<8x128xf32>
    %158 = math.exp %157 : vector<8x128xf32>
    %cst_65 = arith.constant 1.000000e+00 : f32
    %159 = vector.broadcast %cst_65 : f32 to vector<8x128xf32>
    %160 = arith.addf %159, %158 : vector<8x128xf32>
    %161 = arith.divf %159, %160 : vector<8x128xf32>
    %c64_i32_66 = arith.constant 64 : i32
    %162 = tpu.dynamic_rotate %149 by %c64_i32_66 dim 1 : vector<8x128xf32>, i32 -> vector<8x128xf32>
    %163 = arith.mulf %155, %162 : vector<8x128xf32>
    %164 = arith.addf %147, %163 : vector<8x128xf32>
    %165 = math.tanh %164 : vector<8x128xf32>
    %cst_67 = arith.constant 1.000000e+00 : f32
    %166 = vector.broadcast %cst_67 : f32 to vector<8x128xf32>
    %167 = arith.subf %166, %161 : vector<8x128xf32>
    %168 = arith.mulf %167, %165 : vector<8x128xf32>
    %169 = arith.mulf %161, %139 : vector<8x128xf32>
    %170 = arith.addf %168, %169 : vector<8x128xf32>
    %171 = arith.index_cast %143 : i32 to index
    %c0_68 = arith.constant 0 : index
    %172 = vector.load %arg14[%171, %c0_68] : memref<64x128xf32, #tpu.memory_space<vmem>>, vector<8x128xf32>
    tpu.vector_store %arg14[%171, %c0_68], %170 {strides = array<i32>} : memref<64x128xf32, #tpu.memory_space<vmem>>, vector<8x128xf32>,
    %c5_i32 = arith.constant 5 : i32
    %c8_i32_69 = arith.constant 8 : i32
    %173 = arith.muli %c5_i32, %c8_i32_69 : i32
    %174 = tpu.assume_multiple %173, 8 : i32
    %175 = arith.index_cast %174 : i32 to index
    %c0_70 = arith.constant 0 : index
    %176 = vector.load %arg12[%175, %c0_70] : memref<64x128xf32, #tpu.memory_space<vmem>>, vector<8x128xf32>
    %177 = arith.index_cast %174 : i32 to index
    %c0_71 = arith.constant 0 : index
    %178 = vector.load %arg13[%177, %c0_71] : memref<64x128xf32, #tpu.memory_space<vmem>>, vector<8x128xf32>
    %cst_72 = arith.constant dense<0.000000e+00> : vector<8x128xf32>
    %179 = tpu.matmul %170, %13, %cst_72 {dimension_numbers = #tpu.dot_dimension_numbers<[1], [0], [0], [1], [0, 0, 1, 1], [], []>} : vector<8x128xf32>, vector<128x128xf32>, vector<8x128xf32> -> vector<8x128xf32>
    %180 = arith.addf %179, %16 : vector<8x128xf32>
    %181 = arith.addf %176, %180 : vector<8x128xf32>
    %182 = arith.negf %181 : vector<8x128xf32>
    %183 = math.exp %182 : vector<8x128xf32>
    %cst_73 = arith.constant 1.000000e+00 : f32
    %184 = vector.broadcast %cst_73 : f32 to vector<8x128xf32>
    %185 = arith.addf %184, %183 : vector<8x128xf32>
    %186 = arith.divf %184, %185 : vector<8x128xf32>
    %c96_i32_74 = arith.constant 96 : i32
    %187 = tpu.dynamic_rotate %181 by %c96_i32_74 dim 1 : vector<8x128xf32>, i32 -> vector<8x128xf32>
    %188 = arith.negf %187 : vector<8x128xf32>
    %189 = math.exp %188 : vector<8x128xf32>
    %cst_75 = arith.constant 1.000000e+00 : f32
    %190 = vector.broadcast %cst_75 : f32 to vector<8x128xf32>
    %191 = arith.addf %190, %189 : vector<8x128xf32>
    %192 = arith.divf %190, %191 : vector<8x128xf32>
    %c64_i32_76 = arith.constant 64 : i32
    %193 = tpu.dynamic_rotate %180 by %c64_i32_76 dim 1 : vector<8x128xf32>, i32 -> vector<8x128xf32>
    %194 = arith.mulf %186, %193 : vector<8x128xf32>
    %195 = arith.addf %178, %194 : vector<8x128xf32>
    %196 = math.tanh %195 : vector<8x128xf32>
    %cst_77 = arith.constant 1.000000e+00 : f32
    %197 = vector.broadcast %cst_77 : f32 to vector<8x128xf32>
    %198 = arith.subf %197, %192 : vector<8x128xf32>
    %199 = arith.mulf %198, %196 : vector<8x128xf32>
    %200 = arith.mulf %192, %170 : vector<8x128xf32>
    %201 = arith.addf %199, %200 : vector<8x128xf32>
    %202 = arith.index_cast %174 : i32 to index
    %c0_78 = arith.constant 0 : index
    %203 = vector.load %arg14[%202, %c0_78] : memref<64x128xf32, #tpu.memory_space<vmem>>, vector<8x128xf32>
    tpu.vector_store %arg14[%202, %c0_78], %201 {strides = array<i32>} : memref<64x128xf32, #tpu.memory_space<vmem>>, vector<8x128xf32>,
    %c6_i32 = arith.constant 6 : i32
    %c8_i32_79 = arith.constant 8 : i32
    %204 = arith.muli %c6_i32, %c8_i32_79 : i32
    %205 = tpu.assume_multiple %204, 8 : i32
    %206 = arith.index_cast %205 : i32 to index
    %c0_80 = arith.constant 0 : index
    %207 = vector.load %arg12[%206, %c0_80] : memref<64x128xf32, #tpu.memory_space<vmem>>, vector<8x128xf32>
    %208 = arith.index_cast %205 : i32 to index
    %c0_81 = arith.constant 0 : index
    %209 = vector.load %arg13[%208, %c0_81] : memref<64x128xf32, #tpu.memory_space<vmem>>, vector<8x128xf32>
    %cst_82 = arith.constant dense<0.000000e+00> : vector<8x128xf32>
    %210 = tpu.matmul %201, %13, %cst_82 {dimension_numbers = #tpu.dot_dimension_numbers<[1], [0], [0], [1], [0, 0, 1, 1], [], []>} : vector<8x128xf32>, vector<128x128xf32>, vector<8x128xf32> -> vector<8x128xf32>
    %211 = arith.addf %210, %16 : vector<8x128xf32>
    %212 = arith.addf %207, %211 : vector<8x128xf32>
    %213 = arith.negf %212 : vector<8x128xf32>
    %214 = math.exp %213 : vector<8x128xf32>
    %cst_83 = arith.constant 1.000000e+00 : f32
    %215 = vector.broadcast %cst_83 : f32 to vector<8x128xf32>
    %216 = arith.addf %215, %214 : vector<8x128xf32>
    %217 = arith.divf %215, %216 : vector<8x128xf32>
    %c96_i32_84 = arith.constant 96 : i32
    %218 = tpu.dynamic_rotate %212 by %c96_i32_84 dim 1 : vector<8x128xf32>, i32 -> vector<8x128xf32>
    %219 = arith.negf %218 : vector<8x128xf32>
    %220 = math.exp %219 : vector<8x128xf32>
    %cst_85 = arith.constant 1.000000e+00 : f32
    %221 = vector.broadcast %cst_85 : f32 to vector<8x128xf32>
    %222 = arith.addf %221, %220 : vector<8x128xf32>
    %223 = arith.divf %221, %222 : vector<8x128xf32>
    %c64_i32_86 = arith.constant 64 : i32
    %224 = tpu.dynamic_rotate %211 by %c64_i32_86 dim 1 : vector<8x128xf32>, i32 -> vector<8x128xf32>
    %225 = arith.mulf %217, %224 : vector<8x128xf32>
    %226 = arith.addf %209, %225 : vector<8x128xf32>
    %227 = math.tanh %226 : vector<8x128xf32>
    %cst_87 = arith.constant 1.000000e+00 : f32
    %228 = vector.broadcast %cst_87 : f32 to vector<8x128xf32>
    %229 = arith.subf %228, %223 : vector<8x128xf32>
    %230 = arith.mulf %229, %227 : vector<8x128xf32>
    %231 = arith.mulf %223, %201 : vector<8x128xf32>
    %232 = arith.addf %230, %231 : vector<8x128xf32>
    %233 = arith.index_cast %205 : i32 to index
    %c0_88 = arith.constant 0 : index
    %234 = vector.load %arg14[%233, %c0_88] : memref<64x128xf32, #tpu.memory_space<vmem>>, vector<8x128xf32>
    tpu.vector_store %arg14[%233, %c0_88], %232 {strides = array<i32>} : memref<64x128xf32, #tpu.memory_space<vmem>>, vector<8x128xf32>,
    %c7_i32 = arith.constant 7 : i32
    %c8_i32_89 = arith.constant 8 : i32
    %235 = arith.muli %c7_i32, %c8_i32_89 : i32
    %236 = tpu.assume_multiple %235, 8 : i32
    %237 = arith.index_cast %236 : i32 to index
    %c0_90 = arith.constant 0 : index
    %238 = vector.load %arg12[%237, %c0_90] : memref<64x128xf32, #tpu.memory_space<vmem>>, vector<8x128xf32>
    %239 = arith.index_cast %236 : i32 to index
    %c0_91 = arith.constant 0 : index
    %240 = vector.load %arg13[%239, %c0_91] : memref<64x128xf32, #tpu.memory_space<vmem>>, vector<8x128xf32>
    %cst_92 = arith.constant dense<0.000000e+00> : vector<8x128xf32>
    %241 = tpu.matmul %232, %13, %cst_92 {dimension_numbers = #tpu.dot_dimension_numbers<[1], [0], [0], [1], [0, 0, 1, 1], [], []>} : vector<8x128xf32>, vector<128x128xf32>, vector<8x128xf32> -> vector<8x128xf32>
    %242 = arith.addf %241, %16 : vector<8x128xf32>
    %243 = arith.addf %238, %242 : vector<8x128xf32>
    %244 = arith.negf %243 : vector<8x128xf32>
    %245 = math.exp %244 : vector<8x128xf32>
    %cst_93 = arith.constant 1.000000e+00 : f32
    %246 = vector.broadcast %cst_93 : f32 to vector<8x128xf32>
    %247 = arith.addf %246, %245 : vector<8x128xf32>
    %248 = arith.divf %246, %247 : vector<8x128xf32>
    %c96_i32_94 = arith.constant 96 : i32
    %249 = tpu.dynamic_rotate %243 by %c96_i32_94 dim 1 : vector<8x128xf32>, i32 -> vector<8x128xf32>
    %250 = arith.negf %249 : vector<8x128xf32>
    %251 = math.exp %250 : vector<8x128xf32>
    %cst_95 = arith.constant 1.000000e+00 : f32
    %252 = vector.broadcast %cst_95 : f32 to vector<8x128xf32>
    %253 = arith.addf %252, %251 : vector<8x128xf32>
    %254 = arith.divf %252, %253 : vector<8x128xf32>
    %c64_i32_96 = arith.constant 64 : i32
    %255 = tpu.dynamic_rotate %242 by %c64_i32_96 dim 1 : vector<8x128xf32>, i32 -> vector<8x128xf32>
    %256 = arith.mulf %248, %255 : vector<8x128xf32>
    %257 = arith.addf %240, %256 : vector<8x128xf32>
    %258 = math.tanh %257 : vector<8x128xf32>
    %cst_97 = arith.constant 1.000000e+00 : f32
    %259 = vector.broadcast %cst_97 : f32 to vector<8x128xf32>
    %260 = arith.subf %259, %254 : vector<8x128xf32>
    %261 = arith.mulf %260, %258 : vector<8x128xf32>
    %262 = arith.mulf %254, %232 : vector<8x128xf32>
    %263 = arith.addf %261, %262 : vector<8x128xf32>
    %264 = arith.index_cast %236 : i32 to index
    %c0_98 = arith.constant 0 : index
    %265 = vector.load %arg14[%264, %c0_98] : memref<64x128xf32, #tpu.memory_space<vmem>>, vector<8x128xf32>
    tpu.vector_store %arg14[%264, %c0_98], %263 {strides = array<i32>} : memref<64x128xf32, #tpu.memory_space<vmem>>, vector<8x128xf32>,
    %c8_i32_99 = arith.constant 8 : i32
    %c0_100 = arith.constant 0 : index
    %c0_101 = arith.constant 0 : index
    %266 = vector.load %arg10[%c0_100, %c0_101] : memref<8x128xf32, #tpu.memory_space<vmem>>, vector<8x128xf32>
    tpu.vector_store %arg10[%c0_100, %c0_101], %263 {strides = array<i32>} : memref<8x128xf32, #tpu.memory_space<vmem>>, vector<8x128xf32>,
    %c0_102 = arith.constant 0 : index
    %c0_103 = arith.constant 0 : index
    %267 = vector.load %arg14[%c0_102, %c0_103] : memref<64x128xf32, #tpu.memory_space<vmem>>, vector<64x128xf32>
    %c0_104 = arith.constant 0 : index
    %c0_105 = arith.constant 0 : index
    %c0_106 = arith.constant 0 : index
    %268 = vector.load %arg6[%c0_104, %c0_105, %c0_106] : memref<3x128x128xf32, #tpu.memory_space<vmem>>, vector<1x128x128xf32>
    %269 = vector.shape_cast %268 : vector<1x128x128xf32> to vector<128x128xf32>
    %cst_107 = arith.constant dense<0.000000e+00> : vector<64x128xf32>
    %270 = tpu.matmul %267, %269, %cst_107 {dimension_numbers = #tpu.dot_dimension_numbers<[1], [0], [0], [1], [0, 0, 1, 1], [], []>} : vector<64x128xf32>, vector<128x128xf32>, vector<64x128xf32> -> vector<64x128xf32>
    %c0_108 = arith.constant 0 : index
    %c0_109 = arith.constant 0 : index
    %271 = vector.load %arg8[%c0_108, %c0_109] : memref<4x128xf32, #tpu.memory_space<vmem>>, vector<1x128xf32>
    %272 = vector.broadcast %271 : vector<1x128xf32> to vector<64x128xf32>
    %273 = arith.addf %270, %272 : vector<64x128xf32>
    %cst_110 = arith.constant 0.000000e+00 : f32
    %274 = vector.broadcast %cst_110 : f32 to vector<64x128xf32>
    %275 = arith.maximumf %273, %274 : vector<64x128xf32>
    %c1_111 = arith.constant 1 : index
    %c0_112 = arith.constant 0 : index
    %c0_113 = arith.constant 0 : index
    %276 = vector.load %arg6[%c1_111, %c0_112, %c0_113] : memref<3x128x128xf32, #tpu.memory_space<vmem>>, vector<1x128x128xf32>
    %277 = vector.shape_cast %276 : vector<1x128x128xf32> to vector<128x128xf32>
    %cst_114 = arith.constant dense<0.000000e+00> : vector<64x128xf32>
    %278 = tpu.matmul %275, %277, %cst_114 {dimension_numbers = #tpu.dot_dimension_numbers<[1], [0], [0], [1], [0, 0, 1, 1], [], []>} : vector<64x128xf32>, vector<128x128xf32>, vector<64x128xf32> -> vector<64x128xf32>
    %c1_115 = arith.constant 1 : index
    %c0_116 = arith.constant 0 : index
    %279 = vector.load %arg8[%c1_115, %c0_116] : memref<4x128xf32, #tpu.memory_space<vmem>>, vector<1x128xf32>
    %280 = vector.broadcast %279 : vector<1x128xf32> to vector<64x128xf32>
    %281 = arith.addf %278, %280 : vector<64x128xf32>
    %cst_117 = arith.constant 0.000000e+00 : f32
    %282 = vector.broadcast %cst_117 : f32 to vector<64x128xf32>
    %283 = arith.maximumf %281, %282 : vector<64x128xf32>
    %c2 = arith.constant 2 : index
    %c0_118 = arith.constant 0 : index
    %c0_119 = arith.constant 0 : index
    %284 = vector.load %arg6[%c2, %c0_118, %c0_119] : memref<3x128x128xf32, #tpu.memory_space<vmem>>, vector<1x128x128xf32>
    %285 = vector.shape_cast %284 : vector<1x128x128xf32> to vector<128x128xf32>
    %cst_120 = arith.constant dense<0.000000e+00> : vector<64x128xf32>
    %286 = tpu.matmul %283, %285, %cst_120 {dimension_numbers = #tpu.dot_dimension_numbers<[1], [0], [0], [1], [0, 0, 1, 1], [], []>} : vector<64x128xf32>, vector<128x128xf32>, vector<64x128xf32> -> vector<64x128xf32>
    %c2_121 = arith.constant 2 : index
    %c0_122 = arith.constant 0 : index
    %287 = vector.load %arg8[%c2_121, %c0_122] : memref<4x128xf32, #tpu.memory_space<vmem>>, vector<1x128xf32>
    %288 = vector.broadcast %287 : vector<1x128xf32> to vector<64x128xf32>
    %289 = arith.addf %286, %288 : vector<64x128xf32>
    %cst_123 = arith.constant 0.000000e+00 : f32
    %290 = vector.broadcast %cst_123 : f32 to vector<64x128xf32>
    %291 = arith.maximumf %289, %290 : vector<64x128xf32>
    %c0_124 = arith.constant 0 : index
    %c0_125 = arith.constant 0 : index
    %292 = vector.load %arg7[%c0_124, %c0_125] : memref<128x128xf32, #tpu.memory_space<vmem>>, vector<128x128xf32>
    %cst_126 = arith.constant dense<0.000000e+00> : vector<64x128xf32>
    %293 = tpu.matmul %291, %292, %cst_126 {dimension_numbers = #tpu.dot_dimension_numbers<[1], [0], [0], [1], [0, 0, 1, 1], [], []>} : vector<64x128xf32>, vector<128x128xf32>, vector<64x128xf32> -> vector<64x128xf32>
    %c3 = arith.constant 3 : index
    %c0_127 = arith.constant 0 : index
    %294 = vector.load %arg8[%c3, %c0_127] : memref<4x128xf32, #tpu.memory_space<vmem>>, vector<1x128xf32>
    %295 = vector.broadcast %294 : vector<1x128xf32> to vector<64x128xf32>
    %296 = arith.addf %293, %295 : vector<64x128xf32>
    %297 = math.tanh %296 : vector<64x128xf32>
    %cst_128 = arith.constant 2.000000e+01 : f32
    %298 = vector.broadcast %cst_128 : f32 to vector<64x128xf32>
    %299 = arith.mulf %297, %298 : vector<64x128xf32>
    %c0_129 = arith.constant 0 : index
    %c0_130 = arith.constant 0 : index
    %300 = vector.load %arg9[%c0_129, %c0_130] : memref<64x128xf32, #tpu.memory_space<vmem>>, vector<64x128xf32>
    tpu.vector_store %arg9[%c0_129, %c0_130], %299 {strides = array<i32>} : memref<64x128xf32, #tpu.memory_space<vmem>>, vector<64x128xf32>,
    return
  }
  func.func @transform_0(%arg0: i32) -> (i32, i32) {
    %c0_i32 = arith.constant 0 : i32
    %c0_i32_0 = arith.constant 0 : i32
    %c0_i32_1 = arith.constant 0 : i32
    return %c0_i32, %c0_i32_0 : i32, i32
  }
  func.func @transform_1(%arg0: i32) -> (i32, i32) {
    %c0_i32 = arith.constant 0 : i32
    %c0_i32_0 = arith.constant 0 : i32
    %c0_i32_1 = arith.constant 0 : i32
    return %c0_i32, %c0_i32_0 : i32, i32
  }
  func.func @transform_2(%arg0: i32) -> (i32, i32) {
    %c0_i32 = arith.constant 0 : i32
    %c0_i32_0 = arith.constant 0 : i32
    %c0_i32_1 = arith.constant 0 : i32
    return %c0_i32, %c0_i32_0 : i32, i32
  }
  func.func @transform_3(%arg0: i32) -> (i32, i32) {
    %c0_i32 = arith.constant 0 : i32
    %c0_i32_0 = arith.constant 0 : i32
    %c0_i32_1 = arith.constant 0 : i32
    return %c0_i32, %c0_i32_0 : i32, i32
  }
  func.func @transform_4(%arg0: i32) -> (i32, i32) {
    %c0_i32 = arith.constant 0 : i32
    %c0_i32_0 = arith.constant 0 : i32
    %c0_i32_1 = arith.constant 0 : i32
    return %c0_i32, %c0_i32_0 : i32, i32
  }
  func.func @transform_5(%arg0: i32) -> (i32, i32, i32) {
    %c0_i32 = arith.constant 0 : i32
    %c0_i32_0 = arith.constant 0 : i32
    %c0_i32_1 = arith.constant 0 : i32
    %c0_i32_2 = arith.constant 0 : i32
    return %c0_i32, %c0_i32_0, %c0_i32_1 : i32, i32, i32
  }
  func.func @transform_6(%arg0: i32) -> (i32, i32) {
    %c0_i32 = arith.constant 0 : i32
    %c0_i32_0 = arith.constant 0 : i32
    %c0_i32_1 = arith.constant 0 : i32
    return %c0_i32, %c0_i32_0 : i32, i32
  }
  func.func @transform_7(%arg0: i32) -> (i32, i32) {
    %c0_i32 = arith.constant 0 : i32
    %c0_i32_0 = arith.constant 0 : i32
    %c0_i32_1 = arith.constant 0 : i32
    return %c0_i32, %c0_i32_0 : i32, i32
  }
  func.func @transform_8(%arg0: i32) -> (i32, i32) {
    %c0_i32 = arith.constant 0 : i32
    %c0_i32_0 = arith.constant 0 : i32
    %c0_i32_1 = arith.constant 0 : i32
    return %c0_i32, %c0_i32_0 : i32, i32
  }
  func.func @transform_9(%arg0: i32) -> (i32, i32) {
    %c0_i32 = arith.constant 0 : i32
    %c0_i32_0 = arith.constant 0 : i32
    %c0_i32_1 = arith.constant 0 : i32
    return %c0_i32, %c0_i32_0 : i32, i32
  }
}

</mosaic_0001>

<llo_original>
// kernel: tpu_custom_call.1
$region0: #{tpu_custom_call.1}
  #allocation0 [shape = 'u32[]', space=smem, size = 0x4, offset = 0x4, fixed_abs, tag = 'smem constant byte address 0x4 - core index']
  #allocation1 [shape = 'u32[144,128]{1,0:T(1,128)}', space=vmem, size = 0x12000, scoped, tag = 'internal scratch']
  #allocation2 [shape = 'f32[64,128]{1,0:T(8,128)}', space=vmem, size = 0x8000, scoped, tag = 'scratch operand']
  #allocation3 [shape = 'f32[64,128]{1,0:T(8,128)}', space=vmem, size = 0x8000, scoped, tag = 'scratch operand']
  #allocation4 [shape = 'f32[64,128]{1,0:T(8,128)}', space=vmem, size = 0x8000, scoped, tag = 'scratch operand']
  #allocation5 [shape = 'f32[64,128]{1,0:T(8,128)}', space=vmem, size = 0x8000, scoped, tag = 'scratch operand']
  %s0 = inlined_call_operand.vmem [shape: f32[64,6], index: 0, kind: input, shape index: {}]
  %s1 = inlined_call_operand.vmem [shape: f32[8,128], index: 1, kind: input, shape index: {}]
  %s2 = inlined_call_operand.hbm [shape: f32[128,128], index: 2, kind: input, shape index: {}]
  %s3 = inlined_call_operand.hbm [shape: f32[128,128], index: 3, kind: input, shape index: {}]
  %s4 = inlined_call_operand.vmem [shape: f32[2,128], index: 4, kind: input, shape index: {}]
  %s5 = inlined_call_operand.hbm [shape: f32[3,128,128], index: 5, kind: input, shape index: {}]
  %s6 = inlined_call_operand.hbm [shape: f32[128,128], index: 6, kind: input, shape index: {}]
  %s7 = inlined_call_operand.vmem [shape: f32[4,128], index: 7, kind: input, shape index: {}]
  %s8 = inlined_call_operand.hbm [shape: f32[64,128], index: 8, kind: output, shape index: {0}]
  %s9 = inlined_call_operand.hbm [shape: f32[8,128], index: 9, kind: output, shape index: {1}]
  %10 = xla_tuple %s8, %s9
  %s11 = sld [smem:[#allocation0]]
  $region66: #{tpu_custom_call.1} parent=0
    _
  %s13 = ssub.s32 1, %s11
  %s14 = scalar_select 0, %s13, %s11
  $region1: #{tpu_custom_call.1} parent=0
    #allocation6 [shape = 'u8[65536]{0}', space=vmem, size = 0x10000, scoped, tag = 'input window, operand 2, single buffered']
    #allocation7 [shape = 's32[1]{0}', space=sflag, size = 0x4, scoped, tag = 'scoped memory for tpu_custom_call.1']
    #allocation8 [shape = 's32[1]{0}', space=sflag, size = 0x4, scoped, tag = 'scoped memory for tpu_custom_call.1']
    #allocation9 [shape = 'u8[65536]{0}', space=vmem, size = 0x10000, scoped, tag = 'input window, operand 3, single buffered']
    #allocation10 [shape = 's32[1]{0}', space=sflag, size = 0x4, scoped, tag = 'scoped memory for tpu_custom_call.1']
    #allocation11 [shape = 'u8[196608]{0}', space=vmem, size = 0x30000, scoped, tag = 'input window, operand 5, single buffered']
    #allocation12 [shape = 'u8[65536]{0}', space=vmem, size = 0x10000, scoped, tag = 'input window, operand 6, single buffered']
    #allocation13 [shape = 's32[1]{0}', space=sflag, size = 0x4, scoped, tag = 'scoped memory for tpu_custom_call.1']
    #allocation14 [shape = 'u8[32768]{0}', space=vmem, size = 0x8000, scoped, tag = 'output window, operand 0, single buffered']
    #allocation15 [shape = 'u8[4096]{0}', space=vmem, size = 0x1000, scoped, tag = 'output window, operand 1, single buffered']
    #allocation16 [shape = 's32[1]{0}', space=sflag, size = 0x4, scoped, tag = 'scoped memory for tpu_custom_call.1']
    %15 = vsyncpa [#allocation7], 0
    %16 = vsyncpa [#allocation10], 0
    %17 = vsyncpa [#allocation13], 0
    %18 = vsyncpa [#allocation8], 0
    %19 = vsyncpa [#allocation16], 0
    // Predicated region
    $region2: #{tpu_custom_call.1} parent=1 // pred_check
      _
    $region3: #{tpu_custom_call.1} parent=1 // pred_check_branch
      %21 = sbr.rel (0) target = $region5
    $region4: #{tpu_custom_call.1} parent=1 // pred_region
      _
    $region5: #{tpu_custom_call.1} parent=1 // pred_fallthru
      _
    // Predicated region
    $region6: #{tpu_custom_call.1} parent=1 // pred_check
      _
    $region7: #{tpu_custom_call.1} parent=1 // pred_check_branch
      %23 = sbr.rel (0) target = $region9
    $region8: #{tpu_custom_call.1} parent=1 // pred_region
      _
    $region9: #{tpu_custom_call.1} parent=1 // pred_fallthru
      _
    // Predicated region
    $region10: #{tpu_custom_call.1} parent=1 // pred_check
      _
    $region11: #{tpu_custom_call.1} parent=1 // pred_check_branch
      %25 = sbr.rel (0) target = $region13
    $region12: #{tpu_custom_call.1} parent=1 // pred_region
      %s27 = ssub.s32 2048, 2048
      %28 = vsyncadd [#allocation7], %s27
      %s29 = sshll.u32 [#allocation6], 4
      %s30 = int_to_ptr.vmem [resolvable:$true] %s29
      %35 = dma.hbm_to_vmem [thread:$0]  %s2, 2048, %s30, [#allocation7], 128, 128, 8
    $region13: #{tpu_custom_call.1} parent=1 // pred_fallthru
      _
    // Predicated region
    $region14: #{tpu_custom_call.1} parent=1 // pred_check
      _
    $region15: #{tpu_custom_call.1} parent=1 // pred_check_branch
      %37 = sbr.rel (0) target = $region17
    $region16: #{tpu_custom_call.1} parent=1 // pred_region
      %s39 = ssub.s32 2048, 2048
      %40 = vsyncadd [#allocation10], %s39
      %s41 = sshll.u32 [#allocation9], 4
      %s42 = int_to_ptr.vmem [resolvable:$true] %s41
      %47 = dma.hbm_to_vmem [thread:$0]  %s3, 2048, %s42, [#allocation10], 128, 128, 8
    $region17: #{tpu_custom_call.1} parent=1 // pred_fallthru
      _
    // Predicated region
    $region18: #{tpu_custom_call.1} parent=1 // pred_check
      _
    $region19: #{tpu_custom_call.1} parent=1 // pred_check_branch
      %49 = sbr.rel (0) target = $region21
    $region20: #{tpu_custom_call.1} parent=1 // pred_region
      _
    $region21: #{tpu_custom_call.1} parent=1 // pred_fallthru
      _
    // Predicated region
    $region22: #{tpu_custom_call.1} parent=1 // pred_check
      _
    $region23: #{tpu_custom_call.1} parent=1 // pred_check_branch
      %51 = sbr.rel (0) target = $region25
    $region24: #{tpu_custom_call.1} parent=1 // pred_region
      %s53 = ssub.s32 6144, 6144
      %54 = vsyncadd [#allocation10], %s53
      %s55 = sshll.u32 [#allocation11], 4
      %s56 = int_to_ptr.vmem [resolvable:$true] %s55
      %61 = dma.hbm_to_vmem [thread:$0]  %s5, 6144, %s56, [#allocation10], 128, 128, 8
    $region25: #{tpu_custom_call.1} parent=1 // pred_fallthru
      _
    // Predicated region
    $region26: #{tpu_custom_call.1} parent=1 // pred_check
      _
    $region27: #{tpu_custom_call.1} parent=1 // pred_check_branch
      %63 = sbr.rel (0) target = $region29
    $region28: #{tpu_custom_call.1} parent=1 // pred_region
      %s65 = ssub.s32 2048, 2048
      %66 = vsyncadd [#allocation13], %s65
      %s67 = sshll.u32 [#allocation12], 4
      %s68 = int_to_ptr.vmem [resolvable:$true] %s67
      %73 = dma.hbm_to_vmem [thread:$0]  %s6, 2048, %s68, [#allocation13], 128, 128, 8
    $region29: #{tpu_custom_call.1} parent=1 // pred_fallthru
      _
    // Predicated region
    $region30: #{tpu_custom_call.1} parent=1 // pred_check
      _
    $region31: #{tpu_custom_call.1} parent=1 // pred_check_branch
      %75 = sbr.rel (0) target = $region33
    $region32: #{tpu_custom_call.1} parent=1 // pred_region
      _
    $region33: #{tpu_custom_call.1} parent=1 // pred_fallthru
      _
    // Predicated region
    $region34: #{tpu_custom_call.1} parent=1 // pred_check
      _
    $region35: #{tpu_custom_call.1} parent=1 // pred_check_branch
      %77 = sbr.rel (0) target = $region37
    $region36: #{tpu_custom_call.1} parent=1 // pred_region
      %78 = dma.done [#allocation7], 2048
    $region37: #{tpu_custom_call.1} parent=1 // pred_fallthru
      _
    // Predicated region
    $region38: #{tpu_custom_call.1} parent=1 // pred_check
      _
    $region39: #{tpu_custom_call.1} parent=1 // pred_check_branch
      %80 = sbr.rel (0) target = $region41
    $region40: #{tpu_custom_call.1} parent=1 // pred_region
      %81 = dma.done [#allocation10], 2048
    $region41: #{tpu_custom_call.1} parent=1 // pred_fallthru
      _
    // Predicated region
    $region42: #{tpu_custom_call.1} parent=1 // pred_check
      _
    $region43: #{tpu_custom_call.1} parent=1 // pred_check_branch
      %83 = sbr.rel (0) target = $region45
    $region44: #{tpu_custom_call.1} parent=1 // pred_region
      %84 = dma.done [#allocation10], 6144
    $region45: #{tpu_custom_call.1} parent=1 // pred_fallthru
      _
    // Predicated region
    $region46: #{tpu_custom_call.1} parent=1 // pred_check
      _
    $region47: #{tpu_custom_call.1} parent=1 // pred_check_branch
      %86 = sbr.rel (0) target = $region49
    $region48: #{tpu_custom_call.1} parent=1 // pred_region
      %87 = dma.done [#allocation13], 2048
    $region49: #{tpu_custom_call.1} parent=1 // pred_fallthru
      _
    %88 = vst [vmem:[#allocation2] sm:$0xff] 0.0
    %89 = vst [vmem:[#allocation2 + $0x8] sm:$0xff] 0.0
    %90 = vst [vmem:[#allocation2 + $0x10] sm:$0xff] 0.0
    %91 = vst [vmem:[#allocation2 + $0x18] sm:$0xff] 0.0
    %92 = vst [vmem:[#allocation2 + $0x20] sm:$0xff] 0.0
    %93 = vst [vmem:[#allocation2 + $0x28] sm:$0xff] 0.0
    %94 = vst [vmem:[#allocation2 + $0x30] sm:$0xff] 0.0
    %95 = vst [vmem:[#allocation2 + $0x38] sm:$0xff] 0.0
    %v96 = vld [vmem:[%s0] sm:$0xff]
    %v97 = vld [vmem:[%s0 + $0x8] sm:$0xff]
    %v98 = vld [vmem:[%s0 + $0x10] sm:$0xff]
    %v99 = vld [vmem:[%s0 + $0x18] sm:$0xff]
    %v100 = vld [vmem:[%s0 + $0x20] sm:$0xff]
    %v101 = vld [vmem:[%s0 + $0x28] sm:$0xff]
    %v102 = vld [vmem:[%s0 + $0x30] sm:$0xff]
    %v103 = vld [vmem:[%s0 + $0x38] sm:$0xff]
    %vm104 = vcmask 48128
    %105 = vst.msk [vmem:[#allocation2] sm:$0xff] %vm104, %v96
    %106 = vst.msk [vmem:[#allocation2 + $0x8] sm:$0xff] %vm104, %v97
    %107 = vst.msk [vmem:[#allocation2 + $0x10] sm:$0xff] %vm104, %v98
    %108 = vst.msk [vmem:[#allocation2 + $0x18] sm:$0xff] %vm104, %v99
    %109 = vst.msk [vmem:[#allocation2 + $0x20] sm:$0xff] %vm104, %v100
    %110 = vst.msk [vmem:[#allocation2 + $0x28] sm:$0xff] %vm104, %v101
    %111 = vst.msk [vmem:[#allocation2 + $0x30] sm:$0xff] %vm104, %v102
    %112 = vst.msk [vmem:[#allocation2 + $0x38] sm:$0xff] %vm104, %v103
    %v113 = vld [vmem:[#allocation2] sm:$0xff]
    %v114 = vld [vmem:[#allocation2 + $0x8] sm:$0xff]
    %v115 = vld [vmem:[#allocation2 + $0x10] sm:$0xff]
    %v116 = vld [vmem:[#allocation2 + $0x18] sm:$0xff]
    %v117 = vld [vmem:[#allocation2 + $0x20] sm:$0xff]
    %v118 = vld [vmem:[#allocation2 + $0x28] sm:$0xff]
    %v119 = vld [vmem:[#allocation2 + $0x30] sm:$0xff]
    %v120 = vld [vmem:[#allocation2 + $0x38] sm:$0xff]
    %v121 = vld [vmem:[#allocation6] sm:$0xff]
    %v122 = vld [vmem:[#allocation6 + $0x8] sm:$0xff]
    %v123 = vld [vmem:[#allocation6 + $0x10] sm:$0xff]
    %v124 = vld [vmem:[#allocation6 + $0x18] sm:$0xff]
    %v125 = vld [vmem:[#allocation6 + $0x20] sm:$0xff]
    %v126 = vld [vmem:[#allocation6 + $0x28] sm:$0xff]
    %v127 = vld [vmem:[#allocation6 + $0x30] sm:$0xff]
    %v128 = vld [vmem:[#allocation6 + $0x38] sm:$0xff]
    %v129 = vld [vmem:[#allocation6 + $0x40] sm:$0xff]
    %v130 = vld [vmem:[#allocation6 + $0x48] sm:$0xff]
    %v131 = vld [vmem:[#allocation6 + $0x50] sm:$0xff]
    %v132 = vld [vmem:[#allocation6 + $0x58] sm:$0xff]
    %v133 = vld [vmem:[#allocation6 + $0x60] sm:$0xff]
    %v134 = vld [vmem:[#allocation6 + $0x68] sm:$0xff]
    %v135 = vld [vmem:[#allocation6 + $0x70] sm:$0xff]
    %v136 = vld [vmem:[#allocation6 + $0x78] sm:$0xff]
    %v137 = vld [vmem:[%s4] sm:$0x1]
    %v138 = vlaneseq
    %v139 = vshrl.u32 %v138, 7
    %v140 = vsub.s32 0, %v139
    %v141 = vrot.slane %v137, %v140
    %142 = vmatprep.subr.mxu0 0.0
    %143 = vmatpush1.msra.mxu0 %v136
    %144 = vmatprep.subr.mxu0 0.0
    %145 = vmatpush1.msra.mxu0 %v135
    %146 = vmatprep.subr.mxu0 0.0
    %147 = vmatpush1.msra.mxu0 %v134
    %148 = vmatprep.subr.mxu0 0.0
    %149 = vmatpush1.msra.mxu0 %v133
    %150 = vmatprep.subr.mxu0 0.0
    %151 = vmatpush1.msra.mxu0 %v132
    %152 = vmatprep.subr.mxu0 0.0
    %153 = vmatpush1.msra.mxu0 %v131
    %154 = vmatprep.subr.mxu0 0.0
    %155 = vmatpush1.msra.mxu0 %v130
    %156 = vmatprep.subr.mxu0 0.0
    %157 = vmatpush1.msra.mxu0 %v129
    %158 = vmatprep.subr.mxu0 0.0
    %159 = vmatpush1.msra.mxu0 %v128
    %160 = vmatprep.subr.mxu0 0.0
    %161 = vmatpush1.msra.mxu0 %v127
    %162 = vmatprep.subr.mxu0 0.0
    %163 = vmatpush1.msra.mxu0 %v126
    %164 = vmatprep.subr.mxu0 0.0
    %165 = vmatpush1.msra.mxu0 %v125
    %166 = vmatprep.subr.mxu0 0.0
    %167 = vmatpush1.msra.mxu0 %v124
    %168 = vmatprep.subr.mxu0 0.0
    %169 = vmatpush1.msra.mxu0 %v123
    %170 = vmatprep.subr.mxu0 0.0
    %171 = vmatpush1.msra.mxu0 %v122
    %172 = vmatprep.subr.mxu0 0.0
    %173 = vmatpush1.msra.mxu0 %v121
    %174 = vmatprep.subr.mxu0 0.0
    %175 = vmatpush2.msra.mxu0 0.0
    %176 = vmatprep.subr.mxu0 0.0
    %177 = vmatpush2.msra.mxu0 0.0
    %178 = vmatprep.subr.mxu0 0.0
    %179 = vmatpush2.msra.mxu0 0.0
    %180 = vmatprep.subr.mxu0 0.0
    %181 = vmatpush2.msra.mxu0 0.0
    %182 = vmatprep.subr.mxu0 0.0
    %183 = vmatpush2.msra.mxu0 0.0
    %184 = vmatprep.subr.mxu0 0.0
    %185 = vmatpush2.msra.mxu0 0.0
    %186 = vmatprep.subr.mxu0 0.0
    %187 = vmatpush2.msra.mxu0 0.0
    %188 = vmatprep.subr.mxu0 0.0
    %189 = vmatpush2.msra.mxu0 0.0
    %190 = vmatprep.subr.mxu0 0.0
    %191 = vmatpush2.msra.mxu0 0.0
    %192 = vmatprep.subr.mxu0 0.0
    %193 = vmatpush2.msra.mxu0 0.0
    %194 = vmatprep.subr.mxu0 0.0
    %195 = vmatpush2.msra.mxu0 0.0
    %196 = vmatprep.subr.mxu0 0.0
    %197 = vmatpush2.msra.mxu0 0.0
    %198 = vmatprep.subr.mxu0 0.0
    %199 = vmatpush2.msra.mxu0 0.0
    %200 = vmatprep.subr.mxu0 0.0
    %201 = vmatpush2.msra.mxu0 0.0
    %202 = vmatprep.subr.mxu0 0.0
    %203 = vmatpush2.msra.mxu0 0.0
    %204 = vmatprep.subr.mxu0 0.0
    %205 = vmatpush2.msra.mxu0 0.0
    %206 = vmatprep.mubr.f32.mxu0 0.0
    %207 = vmatmul.mubr.f32.gmra.mxu0 %v113
    %v208 = vpop.f32.mrf.mxu0
    %v209 = vadd.f32 %v141, %v208
    %v210 = vpop.f32.mrf.mxu0
    %211 = vmatprep.mubr.f32.mxu0 0.0
    %212 = vmatmul.mubr.f32.gmra.mxu0 %v114
    %v213 = vpop.f32.mrf.mxu0
    %v214 = vadd.f32 %v141, %v213
    %v215 = vpop.f32.mrf.mxu0
    %216 = vmatprep.mubr.f32.mxu0 0.0
    %217 = vmatmul.mubr.f32.gmra.mxu0 %v115
    %v218 = vpop.f32.mrf.mxu0
    %v219 = vadd.f32 %v141, %v218
    %v220 = vpop.f32.mrf.mxu0
    %221 = vmatprep.mubr.f32.mxu0 0.0
    %222 = vmatmul.mubr.f32.gmra.mxu0 %v116
    %v223 = vpop.f32.mrf.mxu0
    %v224 = vadd.f32 %v141, %v223
    %v225 = vpop.f32.mrf.mxu0
    %226 = vmatprep.mubr.f32.mxu0 0.0
    %227 = vmatmul.mubr.f32.gmra.mxu0 %v117
    %v228 = vpop.f32.mrf.mxu0
    %v229 = vadd.f32 %v141, %v228
    %v230 = vpop.f32.mrf.mxu0
    %231 = vmatprep.mubr.f32.mxu0 0.0
    %232 = vmatmul.mubr.f32.gmra.mxu0 %v118
    %v233 = vpop.f32.mrf.mxu0
    %v234 = vadd.f32 %v141, %v233
    %v235 = vpop.f32.mrf.mxu0
    %236 = vmatprep.mubr.f32.mxu0 0.0
    %237 = vmatmul.mubr.f32.gmra.mxu0 %v119
    %v238 = vpop.f32.mrf.mxu0
    %v239 = vadd.f32 %v141, %v238
    %v240 = vpop.f32.mrf.mxu0
    %241 = vmatprep.mubr.f32.mxu0 0.0
    %242 = vmatmul.mubr.f32.gmra.mxu0 %v120
    %v243 = vpop.f32.mrf.mxu0
    %v244 = vadd.f32 %v141, %v243
    %v245 = vpop.f32.mrf.mxu0
    %246 = vdwg.mxu0
    %247 = vst [vmem:[#allocation3] sm:$0xff] %v209
    %248 = vst [vmem:[#allocation3 + $0x8] sm:$0xff] %v214
    %249 = vst [vmem:[#allocation3 + $0x10] sm:$0xff] %v219
    %250 = vst [vmem:[#allocation3 + $0x18] sm:$0xff] %v224
    %251 = vst [vmem:[#allocation3 + $0x20] sm:$0xff] %v229
    %252 = vst [vmem:[#allocation3 + $0x28] sm:$0xff] %v234
    %253 = vst [vmem:[#allocation3 + $0x30] sm:$0xff] %v239
    %254 = vst [vmem:[#allocation3 + $0x38] sm:$0xff] %v244
    %255 = vrot.lane.b32.xlu0 %v209, 64
    %v256 = vpop.permute.xlu0 %255
    %257 = vrot.lane.b32.xlu0 %v214, 64
    %v258 = vpop.permute.xlu0 %257
    %259 = vrot.lane.b32.xlu0 %v219, 64
    %v260 = vpop.permute.xlu0 %259
    %261 = vrot.lane.b32.xlu0 %v224, 64
    %v262 = vpop.permute.xlu0 %261
    %263 = vrot.lane.b32.xlu0 %v229, 64
    %v264 = vpop.permute.xlu0 %263
    %265 = vrot.lane.b32.xlu0 %v234, 64
    %v266 = vpop.permute.xlu0 %265
    %267 = vrot.lane.b32.xlu0 %v239, 64
    %v268 = vpop.permute.xlu0 %267
    %269 = vrot.lane.b32.xlu0 %v244, 64
    %v270 = vpop.permute.xlu0 %269
    %271 = vst [vmem:[#allocation4] sm:$0xff] %v256
    %272 = vst [vmem:[#allocation4 + $0x8] sm:$0xff] %v258
    %273 = vst [vmem:[#allocation4 + $0x10] sm:$0xff] %v260
    %274 = vst [vmem:[#allocation4 + $0x18] sm:$0xff] %v262
    %275 = vst [vmem:[#allocation4 + $0x20] sm:$0xff] %v264
    %276 = vst [vmem:[#allocation4 + $0x28] sm:$0xff] %v266
    %277 = vst [vmem:[#allocation4 + $0x30] sm:$0xff] %v268
    %278 = vst [vmem:[#allocation4 + $0x38] sm:$0xff] %v270
    %v279 = vld [vmem:[#allocation9] sm:$0xff]
    %v280 = vld [vmem:[#allocation9 + $0x8] sm:$0xff]
    %v281 = vld [vmem:[#allocation9 + $0x10] sm:$0xff]
    %v282 = vld [vmem:[#allocation9 + $0x18] sm:$0xff]
    %v283 = vld [vmem:[#allocation9 + $0x20] sm:$0xff]
    %v284 = vld [vmem:[#allocation9 + $0x28] sm:$0xff]
    %v285 = vld [vmem:[#allocation9 + $0x30] sm:$0xff]
    %v286 = vld [vmem:[#allocation9 + $0x38] sm:$0xff]
    %v287 = vld [vmem:[#allocation9 + $0x40] sm:$0xff]
    %v288 = vld [vmem:[#allocation9 + $0x48] sm:$0xff]
    %v289 = vld [vmem:[#allocation9 + $0x50] sm:$0xff]
    %v290 = vld [vmem:[#allocation9 + $0x58] sm:$0xff]
    %v291 = vld [vmem:[#allocation9 + $0x60] sm:$0xff]
    %v292 = vld [vmem:[#allocation9 + $0x68] sm:$0xff]
    %v293 = vld [vmem:[#allocation9 + $0x70] sm:$0xff]
    %v294 = vld [vmem:[#allocation9 + $0x78] sm:$0xff]
    %v295 = vld [vmem:[%s4 + $0x1] sm:$0x1]
    %v296 = vlaneseq
    %v297 = vshrl.u32 %v296, 7
    %v298 = vsub.s32 0, %v297
    %v299 = vrot.slane %v295, %v298
    %v300 = vld [vmem:[%s1] sm:$0xff]
    %v301 = vld [vmem:[#allocation3] sm:$0xff]
    %v302 = vld [vmem:[#allocation4] sm:$0xff]
    %303 = vmatprep.subr.mxu0 0.0
    %304 = vmatpush1.msra.mxu0 %v294
    %305 = vmatprep.subr.mxu0 0.0
    %306 = vmatpush1.msra.mxu0 %v293
    %307 = vmatprep.subr.mxu0 0.0
    %308 = vmatpush1.msra.mxu0 %v292
    %309 = vmatprep.subr.mxu0 0.0
    %310 = vmatpush1.msra.mxu0 %v291
    %311 = vmatprep.subr.mxu0 0.0
    %312 = vmatpush1.msra.mxu0 %v290
    %313 = vmatprep.subr.mxu0 0.0
    %314 = vmatpush1.msra.mxu0 %v289
    %315 = vmatprep.subr.mxu0 0.0
    %316 = vmatpush1.msra.mxu0 %v288
    %317 = vmatprep.subr.mxu0 0.0
    %318 = vmatpush1.msra.mxu0 %v287
    %319 = vmatprep.subr.mxu0 0.0
    %320 = vmatpush1.msra.mxu0 %v286
    %321 = vmatprep.subr.mxu0 0.0
    %322 = vmatpush1.msra.mxu0 %v285
    %323 = vmatprep.subr.mxu0 0.0
    %324 = vmatpush1.msra.mxu0 %v284
    %325 = vmatprep.subr.mxu0 0.0
    %326 = vmatpush1.msra.mxu0 %v283
    %327 = vmatprep.subr.mxu0 0.0
    %328 = vmatpush1.msra.mxu0 %v282
    %329 = vmatprep.subr.mxu0 0.0
    %330 = vmatpush1.msra.mxu0 %v281
    %331 = vmatprep.subr.mxu0 0.0
    %332 = vmatpush1.msra.mxu0 %v280
    %333 = vmatprep.subr.mxu0 0.0
    %334 = vmatpush1.msra.mxu0 %v279
    %335 = vmatprep.subr.mxu0 0.0
    %336 = vmatpush2.msra.mxu0 0.0
    %337 = vmatprep.subr.mxu0 0.0
    %338 = vmatpush2.msra.mxu0 0.0
    %339 = vmatprep.subr.mxu0 0.0
    %340 = vmatpush2.msra.mxu0 0.0
    %341 = vmatprep.subr.mxu0 0.0
    %342 = vmatpush2.msra.mxu0 0.0
    %343 = vmatprep.subr.mxu0 0.0
    %344 = vmatpush2.msra.mxu0 0.0
    %345 = vmatprep.subr.mxu0 0.0
    %346 = vmatpush2.msra.mxu0 0.0
    %347 = vmatprep.subr.mxu0 0.0
    %348 = vmatpush2.msra.mxu0 0.0
    %349 = vmatprep.subr.mxu0 0.0
    %350 = vmatpush2.msra.mxu0 0.0
    %351 = vmatprep.subr.mxu0 0.0
    %352 = vmatpush2.msra.mxu0 0.0
    %353 = vmatprep.subr.mxu0 0.0
    %354 = vmatpush2.msra.mxu0 0.0
    %355 = vmatprep.subr.mxu0 0.0
    %356 = vmatpush2.msra.mxu0 0.0
    %357 = vmatprep.subr.mxu0 0.0
    %358 = vmatpush2.msra.mxu0 0.0
    %359 = vmatprep.subr.mxu0 0.0
    %360 = vmatpush2.msra.mxu0 0.0
    %361 = vmatprep.subr.mxu0 0.0
    %362 = vmatpush2.msra.mxu0 0.0
    %363 = vmatprep.subr.mxu0 0.0
    %364 = vmatpush2.msra.mxu0 0.0
    %365 = vmatprep.subr.mxu0 0.0
    %366 = vmatpush2.msra.mxu0 0.0
    %367 = vmatprep.mubr.f32.mxu0 0.0
    %368 = vmatmul.mubr.f32.gmra.mxu0 %v300
    %v369 = vpop.f32.mrf.mxu0
    %v370 = vadd.f32 %v299, %v369
    %v371 = vpop.f32.mrf.mxu0
    %372 = vdwg.mxu0
    %v373 = vadd.f32 %v301, %v370
    %v374 = vxor.u32 %v373, 2147483648
    %v375 = vmul.f32 %v374, 1.442695
    %v376 = vpow.pop %v375
    %v377 = vadd.f32 %v376, 1.0
    %v378 = vrcp.pop %v377
    %v379 = vmul.f32 1.0, %v378
    %380 = vrot.lane.b32.xlu0 %v373, 96
    %v381 = vpop.permute.xlu0 %380
    %v382 = vxor.u32 %v381, 2147483648
    %v383 = vmul.f32 %v382, 1.442695
    %v384 = vpow.pop %v383
    %v385 = vadd.f32 %v384, 1.0
    %v386 = vrcp.pop %v385
    %v387 = vmul.f32 1.0, %v386
    %388 = vrot.lane.b32.xlu0 %v370, 64
    %v389 = vpop.permute.xlu0 %388
    %v390 = vmul.f32 %v379, %v389
    %v391 = vadd.f32 %v302, %v390
    %v392 = vtanh.pop %v391
    %v393 = vsub.f32 1.0, %v387
    %v394 = vmul.f32 %v393, %v392
    %v395 = vmul.f32 %v387, %v300
    %v396 = vadd.f32 %v394, %v395
    %397 = vst [vmem:[#allocation5] sm:$0xff] %v396
    %s398 = scalar_lea.vmem [#allocation3], 8
    %v399 = vld [vmem:[%s398] sm:$0xff]
    %s400 = scalar_lea.vmem [#allocation4], 8
    %v401 = vld [vmem:[%s400] sm:$0xff]
    %402 = vmatprep.subr.mxu0 0.0
    %403 = vmatpush1.msra.mxu0 %v294
    %404 = vmatprep.subr.mxu0 0.0
    %405 = vmatpush1.msra.mxu0 %v293
    %406 = vmatprep.subr.mxu0 0.0
    %407 = vmatpush1.msra.mxu0 %v292
    %408 = vmatprep.subr.mxu0 0.0
    %409 = vmatpush1.msra.mxu0 %v291
    %410 = vmatprep.subr.mxu0 0.0
    %411 = vmatpush1.msra.mxu0 %v290
    %412 = vmatprep.subr.mxu0 0.0
    %413 = vmatpush1.msra.mxu0 %v289
    %414 = vmatprep.subr.mxu0 0.0
    %415 = vmatpush1.msra.mxu0 %v288
    %416 = vmatprep.subr.mxu0 0.0
    %417 = vmatpush1.msra.mxu0 %v287
    %418 = vmatprep.subr.mxu0 0.0
    %419 = vmatpush1.msra.mxu0 %v286
    %420 = vmatprep.subr.mxu0 0.0
    %421 = vmatpush1.msra.mxu0 %v285
    %422 = vmatprep.subr.mxu0 0.0
    %423 = vmatpush1.msra.mxu0 %v284
    %424 = vmatprep.subr.mxu0 0.0
    %425 = vmatpush1.msra.mxu0 %v283
    %426 = vmatprep.subr.mxu0 0.0
    %427 = vmatpush1.msra.mxu0 %v282
    %428 = vmatprep.subr.mxu0 0.0
    %429 = vmatpush1.msra.mxu0 %v281
    %430 = vmatprep.subr.mxu0 0.0
    %431 = vmatpush1.msra.mxu0 %v280
    %432 = vmatprep.subr.mxu0 0.0
    %433 = vmatpush1.msra.mxu0 %v279
    %434 = vmatprep.subr.mxu0 0.0
    %435 = vmatpush2.msra.mxu0 0.0
    %436 = vmatprep.subr.mxu0 0.0
    %437 = vmatpush2.msra.mxu0 0.0
    %438 = vmatprep.subr.mxu0 0.0
    %439 = vmatpush2.msra.mxu0 0.0
    %440 = vmatprep.subr.mxu0 0.0
    %441 = vmatpush2.msra.mxu0 0.0
    %442 = vmatprep.subr.mxu0 0.0
    %443 = vmatpush2.msra.mxu0 0.0
    %444 = vmatprep.subr.mxu0 0.0
    %445 = vmatpush2.msra.mxu0 0.0
    %446 = vmatprep.subr.mxu0 0.0
    %447 = vmatpush2.msra.mxu0 0.0
    %448 = vmatprep.subr.mxu0 0.0
    %449 = vmatpush2.msra.mxu0 0.0
    %450 = vmatprep.subr.mxu0 0.0
    %451 = vmatpush2.msra.mxu0 0.0
    %452 = vmatprep.subr.mxu0 0.0
    %453 = vmatpush2.msra.mxu0 0.0
    %454 = vmatprep.subr.mxu0 0.0
    %455 = vmatpush2.msra.mxu0 0.0
    %456 = vmatprep.subr.mxu0 0.0
    %457 = vmatpush2.msra.mxu0 0.0
    %458 = vmatprep.subr.mxu0 0.0
    %459 = vmatpush2.msra.mxu0 0.0
    %460 = vmatprep.subr.mxu0 0.0
    %461 = vmatpush2.msra.mxu0 0.0
    %462 = vmatprep.subr.mxu0 0.0
    %463 = vmatpush2.msra.mxu0 0.0
    %464 = vmatprep.subr.mxu0 0.0
    %465 = vmatpush2.msra.mxu0 0.0
    %466 = vmatprep.mubr.f32.mxu0 0.0
    %467 = vmatmul.mubr.f32.gmra.mxu0 %v396
    %v468 = vpop.f32.mrf.mxu0
    %v469 = vadd.f32 %v299, %v468
    %v470 = vpop.f32.mrf.mxu0
    %471 = vdwg.mxu0
    %v472 = vadd.f32 %v399, %v469
    %v473 = vxor.u32 %v472, 2147483648
    %v474 = vmul.f32 %v473, 1.442695
    %v475 = vpow.pop %v474
    %v476 = vadd.f32 %v475, 1.0
    %v477 = vrcp.pop %v476
    %v478 = vmul.f32 1.0, %v477
    %479 = vrot.lane.b32.xlu0 %v472, 96
    %v480 = vpop.permute.xlu0 %479
    %v481 = vxor.u32 %v480, 2147483648
    %v482 = vmul.f32 %v481, 1.442695
    %v483 = vpow.pop %v482
    %v484 = vadd.f32 %v483, 1.0
    %v485 = vrcp.pop %v484
    %v486 = vmul.f32 1.0, %v485
    %487 = vrot.lane.b32.xlu0 %v469, 64
    %v488 = vpop.permute.xlu0 %487
    %v489 = vmul.f32 %v478, %v488
    %v490 = vadd.f32 %v401, %v489
    %v491 = vtanh.pop %v490
    %v492 = vsub.f32 1.0, %v486
    %v493 = vmul.f32 %v492, %v491
    %v494 = vmul.f32 %v486, %v396
    %v495 = vadd.f32 %v493, %v494
    %s496 = scalar_lea.vmem [#allocation5], 8
    %497 = vst [vmem:[%s496] sm:$0xff] %v495
    %s498 = scalar_lea.vmem [#allocation3], 16
    %v499 = vld [vmem:[%s498] sm:$0xff]
    %s500 = scalar_lea.vmem [#allocation4], 16
    %v501 = vld [vmem:[%s500] sm:$0xff]
    %502 = vmatprep.subr.mxu0 0.0
    %503 = vmatpush1.msra.mxu0 %v294
    %504 = vmatprep.subr.mxu0 0.0
    %505 = vmatpush1.msra.mxu0 %v293
    %506 = vmatprep.subr.mxu0 0.0
    %507 = vmatpush1.msra.mxu0 %v292
    %508 = vmatprep.subr.mxu0 0.0
    %509 = vmatpush1.msra.mxu0 %v291
    %510 = vmatprep.subr.mxu0 0.0
    %511 = vmatpush1.msra.mxu0 %v290
    %512 = vmatprep.subr.mxu0 0.0
    %513 = vmatpush1.msra.mxu0 %v289
    %514 = vmatprep.subr.mxu0 0.0
    %515 = vmatpush1.msra.mxu0 %v288
    %516 = vmatprep.subr.mxu0 0.0
    %517 = vmatpush1.msra.mxu0 %v287
    %518 = vmatprep.subr.mxu0 0.0
    %519 = vmatpush1.msra.mxu0 %v286
    %520 = vmatprep.subr.mxu0 0.0
    %521 = vmatpush1.msra.mxu0 %v285
    %522 = vmatprep.subr.mxu0 0.0
    %523 = vmatpush1.msra.mxu0 %v284
    %524 = vmatprep.subr.mxu0 0.0
    %525 = vmatpush1.msra.mxu0 %v283
    %526 = vmatprep.subr.mxu0 0.0
    %527 = vmatpush1.msra.mxu0 %v282
    %528 = vmatprep.subr.mxu0 0.0
    %529 = vmatpush1.msra.mxu0 %v281
    %530 = vmatprep.subr.mxu0 0.0
    %531 = vmatpush1.msra.mxu0 %v280
    %532 = vmatprep.subr.mxu0 0.0
    %533 = vmatpush1.msra.mxu0 %v279
    %534 = vmatprep.subr.mxu0 0.0
    %535 = vmatpush2.msra.mxu0 0.0
    %536 = vmatprep.subr.mxu0 0.0
    %537 = vmatpush2.msra.mxu0 0.0
    %538 = vmatprep.subr.mxu0 0.0
    %539 = vmatpush2.msra.mxu0 0.0
    %540 = vmatprep.subr.mxu0 0.0
    %541 = vmatpush2.msra.mxu0 0.0
    %542 = vmatprep.subr.mxu0 0.0
    %543 = vmatpush2.msra.mxu0 0.0
    %544 = vmatprep.subr.mxu0 0.0
    %545 = vmatpush2.msra.mxu0 0.0
    %546 = vmatprep.subr.mxu0 0.0
    %547 = vmatpush2.msra.mxu0 0.0
    %548 = vmatprep.subr.mxu0 0.0
    %549 = vmatpush2.msra.mxu0 0.0
    %550 = vmatprep.subr.mxu0 0.0
    %551 = vmatpush2.msra.mxu0 0.0
    %552 = vmatprep.subr.mxu0 0.0
    %553 = vmatpush2.msra.mxu0 0.0
    %554 = vmatprep.subr.mxu0 0.0
    %555 = vmatpush2.msra.mxu0 0.0
    %556 = vmatprep.subr.mxu0 0.0
    %557 = vmatpush2.msra.mxu0 0.0
    %558 = vmatprep.subr.mxu0 0.0
    %559 = vmatpush2.msra.mxu0 0.0
    %560 = vmatprep.subr.mxu0 0.0
    %561 = vmatpush2.msra.mxu0 0.0
    %562 = vmatprep.subr.mxu0 0.0
    %563 = vmatpush2.msra.mxu0 0.0
    %564 = vmatprep.subr.mxu0 0.0
    %565 = vmatpush2.msra.mxu0 0.0
    %566 = vmatprep.mubr.f32.mxu0 0.0
    %567 = vmatmul.mubr.f32.gmra.mxu0 %v495
    %v568 = vpop.f32.mrf.mxu0
    %v569 = vadd.f32 %v299, %v568
    %v570 = vpop.f32.mrf.mxu0
    %571 = vdwg.mxu0
    %v572 = vadd.f32 %v499, %v569
    %v573 = vxor.u32 %v572, 2147483648
    %v574 = vmul.f32 %v573, 1.442695
    %v575 = vpow.pop %v574
    %v576 = vadd.f32 %v575, 1.0
    %v577 = vrcp.pop %v576
    %v578 = vmul.f32 1.0, %v577
    %579 = vrot.lane.b32.xlu0 %v572, 96
    %v580 = vpop.permute.xlu0 %579
    %v581 = vxor.u32 %v580, 2147483648
    %v582 = vmul.f32 %v581, 1.442695
    %v583 = vpow.pop %v582
    %v584 = vadd.f32 %v583, 1.0
    %v585 = vrcp.pop %v584
    %v586 = vmul.f32 1.0, %v585
    %587 = vrot.lane.b32.xlu0 %v569, 64
    %v588 = vpop.permute.xlu0 %587
    %v589 = vmul.f32 %v578, %v588
    %v590 = vadd.f32 %v501, %v589
    %v591 = vtanh.pop %v590
    %v592 = vsub.f32 1.0, %v586
    %v593 = vmul.f32 %v592, %v591
    %v594 = vmul.f32 %v586, %v495
    %v595 = vadd.f32 %v593, %v594
    %s596 = scalar_lea.vmem [#allocation5], 16
    %597 = vst [vmem:[%s596] sm:$0xff] %v595
    %s598 = scalar_lea.vmem [#allocation3], 24
    %v599 = vld [vmem:[%s598] sm:$0xff]
    %s600 = scalar_lea.vmem [#allocation4], 24
    %v601 = vld [vmem:[%s600] sm:$0xff]
    %602 = vmatprep.subr.mxu0 0.0
    %603 = vmatpush1.msra.mxu0 %v294
    %604 = vmatprep.subr.mxu0 0.0
    %605 = vmatpush1.msra.mxu0 %v293
    %606 = vmatprep.subr.mxu0 0.0
    %607 = vmatpush1.msra.mxu0 %v292
    %608 = vmatprep.subr.mxu0 0.0
    %609 = vmatpush1.msra.mxu0 %v291
    %610 = vmatprep.subr.mxu0 0.0
    %611 = vmatpush1.msra.mxu0 %v290
    %612 = vmatprep.subr.mxu0 0.0
    %613 = vmatpush1.msra.mxu0 %v289
    %614 = vmatprep.subr.mxu0 0.0
    %615 = vmatpush1.msra.mxu0 %v288
    %616 = vmatprep.subr.mxu0 0.0
    %617 = vmatpush1.msra.mxu0 %v287
    %618 = vmatprep.subr.mxu0 0.0
    %619 = vmatpush1.msra.mxu0 %v286
    %620 = vmatprep.subr.mxu0 0.0
    %621 = vmatpush1.msra.mxu0 %v285
    %622 = vmatprep.subr.mxu0 0.0
    %623 = vmatpush1.msra.mxu0 %v284
    %624 = vmatprep.subr.mxu0 0.0
    %625 = vmatpush1.msra.mxu0 %v283
    %626 = vmatprep.subr.mxu0 0.0
    %627 = vmatpush1.msra.mxu0 %v282
    %628 = vmatprep.subr.mxu0 0.0
    %629 = vmatpush1.msra.mxu0 %v281
    %630 = vmatprep.subr.mxu0 0.0
    %631 = vmatpush1.msra.mxu0 %v280
    %632 = vmatprep.subr.mxu0 0.0
    %633 = vmatpush1.msra.mxu0 %v279
    %634 = vmatprep.subr.mxu0 0.0
    %635 = vmatpush2.msra.mxu0 0.0
    %636 = vmatprep.subr.mxu0 0.0
    %637 = vmatpush2.msra.mxu0 0.0
    %638 = vmatprep.subr.mxu0 0.0
    %639 = vmatpush2.msra.mxu0 0.0
    %640 = vmatprep.subr.mxu0 0.0
    %641 = vmatpush2.msra.mxu0 0.0
    %642 = vmatprep.subr.mxu0 0.0
    %643 = vmatpush2.msra.mxu0 0.0
    %644 = vmatprep.subr.mxu0 0.0
    %645 = vmatpush2.msra.mxu0 0.0
    %646 = vmatprep.subr.mxu0 0.0
    %647 = vmatpush2.msra.mxu0 0.0
    %648 = vmatprep.subr.mxu0 0.0
    %649 = vmatpush2.msra.mxu0 0.0
    %650 = vmatprep.subr.mxu0 0.0
    %651 = vmatpush2.msra.mxu0 0.0
    %652 = vmatprep.subr.mxu0 0.0
    %653 = vmatpush2.msra.mxu0 0.0
    %654 = vmatprep.subr.mxu0 0.0
    %655 = vmatpush2.msra.mxu0 0.0
    %656 = vmatprep.subr.mxu0 0.0
    %657 = vmatpush2.msra.mxu0 0.0
    %658 = vmatprep.subr.mxu0 0.0
    %659 = vmatpush2.msra.mxu0 0.0
    %660 = vmatprep.subr.mxu0 0.0
    %661 = vmatpush2.msra.mxu0 0.0
    %662 = vmatprep.subr.mxu0 0.0
    %663 = vmatpush2.msra.mxu0 0.0
    %664 = vmatprep.subr.mxu0 0.0
    %665 = vmatpush2.msra.mxu0 0.0
    %666 = vmatprep.mubr.f32.mxu0 0.0
    %667 = vmatmul.mubr.f32.gmra.mxu0 %v595
    %v668 = vpop.f32.mrf.mxu0
    %v669 = vadd.f32 %v299, %v668
    %v670 = vpop.f32.mrf.mxu0
    %671 = vdwg.mxu0
    %v672 = vadd.f32 %v599, %v669
    %v673 = vxor.u32 %v672, 2147483648
    %v674 = vmul.f32 %v673, 1.442695
    %v675 = vpow.pop %v674
    %v676 = vadd.f32 %v675, 1.0
    %v677 = vrcp.pop %v676
    %v678 = vmul.f32 1.0, %v677
    %679 = vrot.lane.b32.xlu0 %v672, 96
    %v680 = vpop.permute.xlu0 %679
    %v681 = vxor.u32 %v680, 2147483648
    %v682 = vmul.f32 %v681, 1.442695
    %v683 = vpow.pop %v682
    %v684 = vadd.f32 %v683, 1.0
    %v685 = vrcp.pop %v684
    %v686 = vmul.f32 1.0, %v685
    %687 = vrot.lane.b32.xlu0 %v669, 64
    %v688 = vpop.permute.xlu0 %687
    %v689 = vmul.f32 %v678, %v688
    %v690 = vadd.f32 %v601, %v689
    %v691 = vtanh.pop %v690
    %v692 = vsub.f32 1.0, %v686
    %v693 = vmul.f32 %v692, %v691
    %v694 = vmul.f32 %v686, %v595
    %v695 = vadd.f32 %v693, %v694
    %s696 = scalar_lea.vmem [#allocation5], 24
    %697 = vst [vmem:[%s696] sm:$0xff] %v695
    %s698 = scalar_lea.vmem [#allocation3], 32
    %v699 = vld [vmem:[%s698] sm:$0xff]
    %s700 = scalar_lea.vmem [#allocation4], 32
    %v701 = vld [vmem:[%s700] sm:$0xff]
    %702 = vmatprep.subr.mxu0 0.0
    %703 = vmatpush1.msra.mxu0 %v294
    %704 = vmatprep.subr.mxu0 0.0
    %705 = vmatpush1.msra.mxu0 %v293
    %706 = vmatprep.subr.mxu0 0.0
    %707 = vmatpush1.msra.mxu0 %v292
    %708 = vmatprep.subr.mxu0 0.0
    %709 = vmatpush1.msra.mxu0 %v291
    %710 = vmatprep.subr.mxu0 0.0
    %711 = vmatpush1.msra.mxu0 %v290
    %712 = vmatprep.subr.mxu0 0.0
    %713 = vmatpush1.msra.mxu0 %v289
    %714 = vmatprep.subr.mxu0 0.0
    %715 = vmatpush1.msra.mxu0 %v288
    %716 = vmatprep.subr.mxu0 0.0
    %717 = vmatpush1.msra.mxu0 %v287
    %718 = vmatprep.subr.mxu0 0.0
    %719 = vmatpush1.msra.mxu0 %v286
    %720 = vmatprep.subr.mxu0 0.0
    %721 = vmatpush1.msra.mxu0 %v285
    %722 = vmatprep.subr.mxu0 0.0
    %723 = vmatpush1.msra.mxu0 %v284
    %724 = vmatprep.subr.mxu0 0.0
    %725 = vmatpush1.msra.mxu0 %v283
    %726 = vmatprep.subr.mxu0 0.0
    %727 = vmatpush1.msra.mxu0 %v282
    %728 = vmatprep.subr.mxu0 0.0
    %729 = vmatpush1.msra.mxu0 %v281
    %730 = vmatprep.subr.mxu0 0.0
    %731 = vmatpush1.msra.mxu0 %v280
    %732 = vmatprep.subr.mxu0 0.0
    %733 = vmatpush1.msra.mxu0 %v279
    %734 = vmatprep.subr.mxu0 0.0
    %735 = vmatpush2.msra.mxu0 0.0
    %736 = vmatprep.subr.mxu0 0.0
    %737 = vmatpush2.msra.mxu0 0.0
    %738 = vmatprep.subr.mxu0 0.0
    %739 = vmatpush2.msra.mxu0 0.0
    %740 = vmatprep.subr.mxu0 0.0
    %741 = vmatpush2.msra.mxu0 0.0
    %742 = vmatprep.subr.mxu0 0.0
    %743 = vmatpush2.msra.mxu0 0.0
    %744 = vmatprep.subr.mxu0 0.0
    %745 = vmatpush2.msra.mxu0 0.0
    %746 = vmatprep.subr.mxu0 0.0
    %747 = vmatpush2.msra.mxu0 0.0
    %748 = vmatprep.subr.mxu0 0.0
    %749 = vmatpush2.msra.mxu0 0.0
    %750 = vmatprep.subr.mxu0 0.0
    %751 = vmatpush2.msra.mxu0 0.0
    %752 = vmatprep.subr.mxu0 0.0
    %753 = vmatpush2.msra.mxu0 0.0
    %754 = vmatprep.subr.mxu0 0.0
    %755 = vmatpush2.msra.mxu0 0.0
    %756 = vmatprep.subr.mxu0 0.0
    %757 = vmatpush2.msra.mxu0 0.0
    %758 = vmatprep.subr.mxu0 0.0
    %759 = vmatpush2.msra.mxu0 0.0
    %760 = vmatprep.subr.mxu0 0.0
    %761 = vmatpush2.msra.mxu0 0.0
    %762 = vmatprep.subr.mxu0 0.0
    %763 = vmatpush2.msra.mxu0 0.0
    %764 = vmatprep.subr.mxu0 0.0
    %765 = vmatpush2.msra.mxu0 0.0
    %766 = vmatprep.mubr.f32.mxu0 0.0
    %767 = vmatmul.mubr.f32.gmra.mxu0 %v695
    %v768 = vpop.f32.mrf.mxu0
    %v769 = vadd.f32 %v299, %v768
    %v770 = vpop.f32.mrf.mxu0
    %771 = vdwg.mxu0
    %v772 = vadd.f32 %v699, %v769
    %v773 = vxor.u32 %v772, 2147483648
    %v774 = vmul.f32 %v773, 1.442695
    %v775 = vpow.pop %v774
    %v776 = vadd.f32 %v775, 1.0
    %v777 = vrcp.pop %v776
    %v778 = vmul.f32 1.0, %v777
    %779 = vrot.lane.b32.xlu0 %v772, 96
    %v780 = vpop.permute.xlu0 %779
    %v781 = vxor.u32 %v780, 2147483648
    %v782 = vmul.f32 %v781, 1.442695
    %v783 = vpow.pop %v782
    %v784 = vadd.f32 %v783, 1.0
    %v785 = vrcp.pop %v784
    %v786 = vmul.f32 1.0, %v785
    %787 = vrot.lane.b32.xlu0 %v769, 64
    %v788 = vpop.permute.xlu0 %787
    %v789 = vmul.f32 %v778, %v788
    %v790 = vadd.f32 %v701, %v789
    %v791 = vtanh.pop %v790
    %v792 = vsub.f32 1.0, %v786
    %v793 = vmul.f32 %v792, %v791
    %v794 = vmul.f32 %v786, %v695
    %v795 = vadd.f32 %v793, %v794
    %s796 = scalar_lea.vmem [#allocation5], 32
    %797 = vst [vmem:[%s796] sm:$0xff] %v795
    %s798 = scalar_lea.vmem [#allocation3], 40
    %v799 = vld [vmem:[%s798] sm:$0xff]
    %s800 = scalar_lea.vmem [#allocation4], 40
    %v801 = vld [vmem:[%s800] sm:$0xff]
    %802 = vmatprep.subr.mxu0 0.0
    %803 = vmatpush1.msra.mxu0 %v294
    %804 = vmatprep.subr.mxu0 0.0
    %805 = vmatpush1.msra.mxu0 %v293
    %806 = vmatprep.subr.mxu0 0.0
    %807 = vmatpush1.msra.mxu0 %v292
    %808 = vmatprep.subr.mxu0 0.0
    %809 = vmatpush1.msra.mxu0 %v291
    %810 = vmatprep.subr.mxu0 0.0
    %811 = vmatpush1.msra.mxu0 %v290
    %812 = vmatprep.subr.mxu0 0.0
    %813 = vmatpush1.msra.mxu0 %v289
    %814 = vmatprep.subr.mxu0 0.0
    %815 = vmatpush1.msra.mxu0 %v288
    %816 = vmatprep.subr.mxu0 0.0
    %817 = vmatpush1.msra.mxu0 %v287
    %818 = vmatprep.subr.mxu0 0.0
    %819 = vmatpush1.msra.mxu0 %v286
    %820 = vmatprep.subr.mxu0 0.0
    %821 = vmatpush1.msra.mxu0 %v285
    %822 = vmatprep.subr.mxu0 0.0
    %823 = vmatpush1.msra.mxu0 %v284
    %824 = vmatprep.subr.mxu0 0.0
    %825 = vmatpush1.msra.mxu0 %v283
    %826 = vmatprep.subr.mxu0 0.0
    %827 = vmatpush1.msra.mxu0 %v282
    %828 = vmatprep.subr.mxu0 0.0
    %829 = vmatpush1.msra.mxu0 %v281
    %830 = vmatprep.subr.mxu0 0.0
    %831 = vmatpush1.msra.mxu0 %v280
    %832 = vmatprep.subr.mxu0 0.0
    %833 = vmatpush1.msra.mxu0 %v279
    %834 = vmatprep.subr.mxu0 0.0
    %835 = vmatpush2.msra.mxu0 0.0
    %836 = vmatprep.subr.mxu0 0.0
    %837 = vmatpush2.msra.mxu0 0.0
    %838 = vmatprep.subr.mxu0 0.0
    %839 = vmatpush2.msra.mxu0 0.0
    %840 = vmatprep.subr.mxu0 0.0
    %841 = vmatpush2.msra.mxu0 0.0
    %842 = vmatprep.subr.mxu0 0.0
    %843 = vmatpush2.msra.mxu0 0.0
    %844 = vmatprep.subr.mxu0 0.0
    %845 = vmatpush2.msra.mxu0 0.0
    %846 = vmatprep.subr.mxu0 0.0
    %847 = vmatpush2.msra.mxu0 0.0
    %848 = vmatprep.subr.mxu0 0.0
    %849 = vmatpush2.msra.mxu0 0.0
    %850 = vmatprep.subr.mxu0 0.0
    %851 = vmatpush2.msra.mxu0 0.0
    %852 = vmatprep.subr.mxu0 0.0
    %853 = vmatpush2.msra.mxu0 0.0
    %854 = vmatprep.subr.mxu0 0.0
    %855 = vmatpush2.msra.mxu0 0.0
    %856 = vmatprep.subr.mxu0 0.0
    %857 = vmatpush2.msra.mxu0 0.0
    %858 = vmatprep.subr.mxu0 0.0
    %859 = vmatpush2.msra.mxu0 0.0
    %860 = vmatprep.subr.mxu0 0.0
    %861 = vmatpush2.msra.mxu0 0.0
    %862 = vmatprep.subr.mxu0 0.0
    %863 = vmatpush2.msra.mxu0 0.0
    %864 = vmatprep.subr.mxu0 0.0
    %865 = vmatpush2.msra.mxu0 0.0
    %866 = vmatprep.mubr.f32.mxu0 0.0
    %867 = vmatmul.mubr.f32.gmra.mxu0 %v795
    %v868 = vpop.f32.mrf.mxu0
    %v869 = vadd.f32 %v299, %v868
    %v870 = vpop.f32.mrf.mxu0
    %871 = vdwg.mxu0
    %v872 = vadd.f32 %v799, %v869
    %v873 = vxor.u32 %v872, 2147483648
    %v874 = vmul.f32 %v873, 1.442695
    %v875 = vpow.pop %v874
    %v876 = vadd.f32 %v875, 1.0
    %v877 = vrcp.pop %v876
    %v878 = vmul.f32 1.0, %v877
    %879 = vrot.lane.b32.xlu0 %v872, 96
    %v880 = vpop.permute.xlu0 %879
    %v881 = vxor.u32 %v880, 2147483648
    %v882 = vmul.f32 %v881, 1.442695
    %v883 = vpow.pop %v882
    %v884 = vadd.f32 %v883, 1.0
    %v885 = vrcp.pop %v884
    %v886 = vmul.f32 1.0, %v885
    %887 = vrot.lane.b32.xlu0 %v869, 64
    %v888 = vpop.permute.xlu0 %887
    %v889 = vmul.f32 %v878, %v888
    %v890 = vadd.f32 %v801, %v889
    %v891 = vtanh.pop %v890
    %v892 = vsub.f32 1.0, %v886
    %v893 = vmul.f32 %v892, %v891
    %v894 = vmul.f32 %v886, %v795
    %v895 = vadd.f32 %v893, %v894
    %s896 = scalar_lea.vmem [#allocation5], 40
    %897 = vst [vmem:[%s896] sm:$0xff] %v895
    %s898 = scalar_lea.vmem [#allocation3], 48
    %v899 = vld [vmem:[%s898] sm:$0xff]
    %s900 = scalar_lea.vmem [#allocation4], 48
    %v901 = vld [vmem:[%s900] sm:$0xff]
    %902 = vmatprep.subr.mxu0 0.0
    %903 = vmatpush1.msra.mxu0 %v294
    %904 = vmatprep.subr.mxu0 0.0
    %905 = vmatpush1.msra.mxu0 %v293
    %906 = vmatprep.subr.mxu0 0.0
    %907 = vmatpush1.msra.mxu0 %v292
    %908 = vmatprep.subr.mxu0 0.0
    %909 = vmatpush1.msra.mxu0 %v291
    %910 = vmatprep.subr.mxu0 0.0
    %911 = vmatpush1.msra.mxu0 %v290
    %912 = vmatprep.subr.mxu0 0.0
    %913 = vmatpush1.msra.mxu0 %v289
    %914 = vmatprep.subr.mxu0 0.0
    %915 = vmatpush1.msra.mxu0 %v288
    %916 = vmatprep.subr.mxu0 0.0
    %917 = vmatpush1.msra.mxu0 %v287
    %918 = vmatprep.subr.mxu0 0.0
    %919 = vmatpush1.msra.mxu0 %v286
    %920 = vmatprep.subr.mxu0 0.0
    %921 = vmatpush1.msra.mxu0 %v285
    %922 = vmatprep.subr.mxu0 0.0
    %923 = vmatpush1.msra.mxu0 %v284
    %924 = vmatprep.subr.mxu0 0.0
    %925 = vmatpush1.msra.mxu0 %v283
    %926 = vmatprep.subr.mxu0 0.0
    %927 = vmatpush1.msra.mxu0 %v282
    %928 = vmatprep.subr.mxu0 0.0
    %929 = vmatpush1.msra.mxu0 %v281
    %930 = vmatprep.subr.mxu0 0.0
    %931 = vmatpush1.msra.mxu0 %v280
    %932 = vmatprep.subr.mxu0 0.0
    %933 = vmatpush1.msra.mxu0 %v279
    %934 = vmatprep.subr.mxu0 0.0
    %935 = vmatpush2.msra.mxu0 0.0
    %936 = vmatprep.subr.mxu0 0.0
    %937 = vmatpush2.msra.mxu0 0.0
    %938 = vmatprep.subr.mxu0 0.0
    %939 = vmatpush2.msra.mxu0 0.0
    %940 = vmatprep.subr.mxu0 0.0
    %941 = vmatpush2.msra.mxu0 0.0
    %942 = vmatprep.subr.mxu0 0.0
    %943 = vmatpush2.msra.mxu0 0.0
    %944 = vmatprep.subr.mxu0 0.0
    %945 = vmatpush2.msra.mxu0 0.0
    %946 = vmatprep.subr.mxu0 0.0
    %947 = vmatpush2.msra.mxu0 0.0
    %948 = vmatprep.subr.mxu0 0.0
    %949 = vmatpush2.msra.mxu0 0.0
    %950 = vmatprep.subr.mxu0 0.0
    %951 = vmatpush2.msra.mxu0 0.0
    %952 = vmatprep.subr.mxu0 0.0
    %953 = vmatpush2.msra.mxu0 0.0
    %954 = vmatprep.subr.mxu0 0.0
    %955 = vmatpush2.msra.mxu0 0.0
    %956 = vmatprep.subr.mxu0 0.0
    %957 = vmatpush2.msra.mxu0 0.0
    %958 = vmatprep.subr.mxu0 0.0
    %959 = vmatpush2.msra.mxu0 0.0
    %960 = vmatprep.subr.mxu0 0.0
    %961 = vmatpush2.msra.mxu0 0.0
    %962 = vmatprep.subr.mxu0 0.0
    %963 = vmatpush2.msra.mxu0 0.0
    %964 = vmatprep.subr.mxu0 0.0
    %965 = vmatpush2.msra.mxu0 0.0
    %966 = vmatprep.mubr.f32.mxu0 0.0
    %967 = vmatmul.mubr.f32.gmra.mxu0 %v895
    %v968 = vpop.f32.mrf.mxu0
    %v969 = vadd.f32 %v299, %v968
    %v970 = vpop.f32.mrf.mxu0
    %971 = vdwg.mxu0
    %v972 = vadd.f32 %v899, %v969
    %v973 = vxor.u32 %v972, 2147483648
    %v974 = vmul.f32 %v973, 1.442695
    %v975 = vpow.pop %v974
    %v976 = vadd.f32 %v975, 1.0
    %v977 = vrcp.pop %v976
    %v978 = vmul.f32 1.0, %v977
    %979 = vrot.lane.b32.xlu0 %v972, 96
    %v980 = vpop.permute.xlu0 %979
    %v981 = vxor.u32 %v980, 2147483648
    %v982 = vmul.f32 %v981, 1.442695
    %v983 = vpow.pop %v982
    %v984 = vadd.f32 %v983, 1.0
    %v985 = vrcp.pop %v984
    %v986 = vmul.f32 1.0, %v985
    %987 = vrot.lane.b32.xlu0 %v969, 64
    %v988 = vpop.permute.xlu0 %987
    %v989 = vmul.f32 %v978, %v988
    %v990 = vadd.f32 %v901, %v989
    %v991 = vtanh.pop %v990
    %v992 = vsub.f32 1.0, %v986
    %v993 = vmul.f32 %v992, %v991
    %v994 = vmul.f32 %v986, %v895
    %v995 = vadd.f32 %v993, %v994
    %s996 = scalar_lea.vmem [#allocation5], 48
    %997 = vst [vmem:[%s996] sm:$0xff] %v995
    %s998 = scalar_lea.vmem [#allocation3], 56
    %v999 = vld [vmem:[%s998] sm:$0xff]
    %s1000 = scalar_lea.vmem [#allocation4], 56
    %v1001 = vld [vmem:[%s1000] sm:$0xff]
    %1002 = vmatprep.subr.mxu0 0.0
    %1003 = vmatpush1.msra.mxu0 %v294
    %1004 = vmatprep.subr.mxu0 0.0
    %1005 = vmatpush1.msra.mxu0 %v293
    %1006 = vmatprep.subr.mxu0 0.0
    %1007 = vmatpush1.msra.mxu0 %v292
    %1008 = vmatprep.subr.mxu0 0.0
    %1009 = vmatpush1.msra.mxu0 %v291
    %1010 = vmatprep.subr.mxu0 0.0
    %1011 = vmatpush1.msra.mxu0 %v290
    %1012 = vmatprep.subr.mxu0 0.0
    %1013 = vmatpush1.msra.mxu0 %v289
    %1014 = vmatprep.subr.mxu0 0.0
    %1015 = vmatpush1.msra.mxu0 %v288
    %1016 = vmatprep.subr.mxu0 0.0
    %1017 = vmatpush1.msra.mxu0 %v287
    %1018 = vmatprep.subr.mxu0 0.0
    %1019 = vmatpush1.msra.mxu0 %v286
    %1020 = vmatprep.subr.mxu0 0.0
    %1021 = vmatpush1.msra.mxu0 %v285
    %1022 = vmatprep.subr.mxu0 0.0
    %1023 = vmatpush1.msra.mxu0 %v284
    %1024 = vmatprep.subr.mxu0 0.0
    %1025 = vmatpush1.msra.mxu0 %v283
    %1026 = vmatprep.subr.mxu0 0.0
    %1027 = vmatpush1.msra.mxu0 %v282
    %1028 = vmatprep.subr.mxu0 0.0
    %1029 = vmatpush1.msra.mxu0 %v281
    %1030 = vmatprep.subr.mxu0 0.0
    %1031 = vmatpush1.msra.mxu0 %v280
    %1032 = vmatprep.subr.mxu0 0.0
    %1033 = vmatpush1.msra.mxu0 %v279
    %1034 = vmatprep.subr.mxu0 0.0
    %1035 = vmatpush2.msra.mxu0 0.0
    %1036 = vmatprep.subr.mxu0 0.0
    %1037 = vmatpush2.msra.mxu0 0.0
    %1038 = vmatprep.subr.mxu0 0.0
    %1039 = vmatpush2.msra.mxu0 0.0
    %1040 = vmatprep.subr.mxu0 0.0
    %1041 = vmatpush2.msra.mxu0 0.0
    %1042 = vmatprep.subr.mxu0 0.0
    %1043 = vmatpush2.msra.mxu0 0.0
    %1044 = vmatprep.subr.mxu0 0.0
    %1045 = vmatpush2.msra.mxu0 0.0
    %1046 = vmatprep.subr.mxu0 0.0
    %1047 = vmatpush2.msra.mxu0 0.0
    %1048 = vmatprep.subr.mxu0 0.0
    %1049 = vmatpush2.msra.mxu0 0.0
    %1050 = vmatprep.subr.mxu0 0.0
    %1051 = vmatpush2.msra.mxu0 0.0
    %1052 = vmatprep.subr.mxu0 0.0
    %1053 = vmatpush2.msra.mxu0 0.0
    %1054 = vmatprep.subr.mxu0 0.0
    %1055 = vmatpush2.msra.mxu0 0.0
    %1056 = vmatprep.subr.mxu0 0.0
    %1057 = vmatpush2.msra.mxu0 0.0
    %1058 = vmatprep.subr.mxu0 0.0
    %1059 = vmatpush2.msra.mxu0 0.0
    %1060 = vmatprep.subr.mxu0 0.0
    %1061 = vmatpush2.msra.mxu0 0.0
    %1062 = vmatprep.subr.mxu0 0.0
    %1063 = vmatpush2.msra.mxu0 0.0
    %1064 = vmatprep.subr.mxu0 0.0
    %1065 = vmatpush2.msra.mxu0 0.0
    %1066 = vmatprep.mubr.f32.mxu0 0.0
    %1067 = vmatmul.mubr.f32.gmra.mxu0 %v995
    %v1068 = vpop.f32.mrf.mxu0
    %v1069 = vadd.f32 %v299, %v1068
    %v1070 = vpop.f32.mrf.mxu0
    %1071 = vdwg.mxu0
    %v1072 = vadd.f32 %v999, %v1069
    %v1073 = vxor.u32 %v1072, 2147483648
    %v1074 = vmul.f32 %v1073, 1.442695
    %v1075 = vpow.pop %v1074
    %v1076 = vadd.f32 %v1075, 1.0
    %v1077 = vrcp.pop %v1076
    %v1078 = vmul.f32 1.0, %v1077
    %1079 = vrot.lane.b32.xlu0 %v1072, 96
    %v1080 = vpop.permute.xlu0 %1079
    %v1081 = vxor.u32 %v1080, 2147483648
    %v1082 = vmul.f32 %v1081, 1.442695
    %v1083 = vpow.pop %v1082
    %v1084 = vadd.f32 %v1083, 1.0
    %v1085 = vrcp.pop %v1084
    %v1086 = vmul.f32 1.0, %v1085
    %1087 = vrot.lane.b32.xlu0 %v1069, 64
    %v1088 = vpop.permute.xlu0 %1087
    %v1089 = vmul.f32 %v1078, %v1088
    %v1090 = vadd.f32 %v1001, %v1089
    %v1091 = vtanh.pop %v1090
    %v1092 = vsub.f32 1.0, %v1086
    %v1093 = vmul.f32 %v1092, %v1091
    %v1094 = vmul.f32 %v1086, %v995
    %v1095 = vadd.f32 %v1093, %v1094
    %s1096 = scalar_lea.vmem [#allocation5], 56
    %1097 = vst [vmem:[%s1096] sm:$0xff] %v1095
    %1098 = vst [vmem:[#allocation15] sm:$0xff] %v1095
    %v1099 = vld [vmem:[#allocation5] sm:$0xff]
    %v1100 = vld [vmem:[#allocation5 + $0x8] sm:$0xff]
    %v1101 = vld [vmem:[#allocation5 + $0x10] sm:$0xff]
    %v1102 = vld [vmem:[#allocation5 + $0x18] sm:$0xff]
    %v1103 = vld [vmem:[#allocation5 + $0x20] sm:$0xff]
    %v1104 = vld [vmem:[#allocation5 + $0x28] sm:$0xff]
    %v1105 = vld [vmem:[#allocation5 + $0x30] sm:$0xff]
    %v1106 = vld [vmem:[#allocation5 + $0x38] sm:$0xff]
    %v1107 = vld [vmem:[#allocation11] sm:$0xff]
    %v1108 = vld [vmem:[#allocation11 + $0x8] sm:$0xff]
    %v1109 = vld [vmem:[#allocation11 + $0x10] sm:$0xff]
    %v1110 = vld [vmem:[#allocation11 + $0x18] sm:$0xff]
    %v1111 = vld [vmem:[#allocation11 + $0x20] sm:$0xff]
    %v1112 = vld [vmem:[#allocation11 + $0x28] sm:$0xff]
    %v1113 = vld [vmem:[#allocation11 + $0x30] sm:$0xff]
    %v1114 = vld [vmem:[#allocation11 + $0x38] sm:$0xff]
    %v1115 = vld [vmem:[#allocation11 + $0x40] sm:$0xff]
    %v1116 = vld [vmem:[#allocation11 + $0x48] sm:$0xff]
    %v1117 = vld [vmem:[#allocation11 + $0x50] sm:$0xff]
    %v1118 = vld [vmem:[#allocation11 + $0x58] sm:$0xff]
    %v1119 = vld [vmem:[#allocation11 + $0x60] sm:$0xff]
    %v1120 = vld [vmem:[#allocation11 + $0x68] sm:$0xff]
    %v1121 = vld [vmem:[#allocation11 + $0x70] sm:$0xff]
    %v1122 = vld [vmem:[#allocation11 + $0x78] sm:$0xff]
    %v1123 = vld [vmem:[%s7] sm:$0x1]
    %v1124 = vlaneseq
    %v1125 = vshrl.u32 %v1124, 7
    %v1126 = vsub.s32 0, %v1125
    %v1127 = vrot.slane %v1123, %v1126
    %1128 = vmatprep.subr.mxu0 0.0
    %1129 = vmatpush1.msra.mxu0 %v1122
    %1130 = vmatprep.subr.mxu0 0.0
    %1131 = vmatpush1.msra.mxu0 %v1121
    %1132 = vmatprep.subr.mxu0 0.0
    %1133 = vmatpush1.msra.mxu0 %v1120
    %1134 = vmatprep.subr.mxu0 0.0
    %1135 = vmatpush1.msra.mxu0 %v1119
    %1136 = vmatprep.subr.mxu0 0.0
    %1137 = vmatpush1.msra.mxu0 %v1118
    %1138 = vmatprep.subr.mxu0 0.0
    %1139 = vmatpush1.msra.mxu0 %v1117
    %1140 = vmatprep.subr.mxu0 0.0
    %1141 = vmatpush1.msra.mxu0 %v1116
    %1142 = vmatprep.subr.mxu0 0.0
    %1143 = vmatpush1.msra.mxu0 %v1115
    %1144 = vmatprep.subr.mxu0 0.0
    %1145 = vmatpush1.msra.mxu0 %v1114
    %1146 = vmatprep.subr.mxu0 0.0
    %1147 = vmatpush1.msra.mxu0 %v1113
    %1148 = vmatprep.subr.mxu0 0.0
    %1149 = vmatpush1.msra.mxu0 %v1112
    %1150 = vmatprep.subr.mxu0 0.0
    %1151 = vmatpush1.msra.mxu0 %v1111
    %1152 = vmatprep.subr.mxu0 0.0
    %1153 = vmatpush1.msra.mxu0 %v1110
    %1154 = vmatprep.subr.mxu0 0.0
    %1155 = vmatpush1.msra.mxu0 %v1109
    %1156 = vmatprep.subr.mxu0 0.0
    %1157 = vmatpush1.msra.mxu0 %v1108
    %1158 = vmatprep.subr.mxu0 0.0
    %1159 = vmatpush1.msra.mxu0 %v1107
    %1160 = vmatprep.subr.mxu0 0.0
    %1161 = vmatpush2.msra.mxu0 0.0
    %1162 = vmatprep.subr.mxu0 0.0
    %1163 = vmatpush2.msra.mxu0 0.0
    %1164 = vmatprep.subr.mxu0 0.0
    %1165 = vmatpush2.msra.mxu0 0.0
    %1166 = vmatprep.subr.mxu0 0.0
    %1167 = vmatpush2.msra.mxu0 0.0
    %1168 = vmatprep.subr.mxu0 0.0
    %1169 = vmatpush2.msra.mxu0 0.0
    %1170 = vmatprep.subr.mxu0 0.0
    %1171 = vmatpush2.msra.mxu0 0.0
    %1172 = vmatprep.subr.mxu0 0.0
    %1173 = vmatpush2.msra.mxu0 0.0
    %1174 = vmatprep.subr.mxu0 0.0
    %1175 = vmatpush2.msra.mxu0 0.0
    %1176 = vmatprep.subr.mxu0 0.0
    %1177 = vmatpush2.msra.mxu0 0.0
    %1178 = vmatprep.subr.mxu0 0.0
    %1179 = vmatpush2.msra.mxu0 0.0
    %1180 = vmatprep.subr.mxu0 0.0
    %1181 = vmatpush2.msra.mxu0 0.0
    %1182 = vmatprep.subr.mxu0 0.0
    %1183 = vmatpush2.msra.mxu0 0.0
    %1184 = vmatprep.subr.mxu0 0.0
    %1185 = vmatpush2.msra.mxu0 0.0
    %1186 = vmatprep.subr.mxu0 0.0
    %1187 = vmatpush2.msra.mxu0 0.0
    %1188 = vmatprep.subr.mxu0 0.0
    %1189 = vmatpush2.msra.mxu0 0.0
    %1190 = vmatprep.subr.mxu0 0.0
    %1191 = vmatpush2.msra.mxu0 0.0
    %1192 = vmatprep.mubr.f32.mxu0 0.0
    %1193 = vmatmul.mubr.f32.gmra.mxu0 %v1099
    %v1194 = vpop.f32.mrf.mxu0
    %v1195 = vadd.f32 %v1127, %v1194
    %v1196 = vpop.f32.mrf.mxu0
    %1197 = vmatprep.mubr.f32.mxu0 0.0
    %1198 = vmatmul.mubr.f32.gmra.mxu0 %v1100
    %v1199 = vpop.f32.mrf.mxu0
    %v1200 = vadd.f32 %v1127, %v1199
    %v1201 = vpop.f32.mrf.mxu0
    %1202 = vmatprep.mubr.f32.mxu0 0.0
    %1203 = vmatmul.mubr.f32.gmra.mxu0 %v1101
    %v1204 = vpop.f32.mrf.mxu0
    %v1205 = vadd.f32 %v1127, %v1204
    %v1206 = vpop.f32.mrf.mxu0
    %1207 = vmatprep.mubr.f32.mxu0 0.0
    %1208 = vmatmul.mubr.f32.gmra.mxu0 %v1102
    %v1209 = vpop.f32.mrf.mxu0
    %v1210 = vadd.f32 %v1127, %v1209
    %v1211 = vpop.f32.mrf.mxu0
    %1212 = vmatprep.mubr.f32.mxu0 0.0
    %1213 = vmatmul.mubr.f32.gmra.mxu0 %v1103
    %v1214 = vpop.f32.mrf.mxu0
    %v1215 = vadd.f32 %v1127, %v1214
    %v1216 = vpop.f32.mrf.mxu0
    %1217 = vmatprep.mubr.f32.mxu0 0.0
    %1218 = vmatmul.mubr.f32.gmra.mxu0 %v1104
    %v1219 = vpop.f32.mrf.mxu0
    %v1220 = vadd.f32 %v1127, %v1219
    %v1221 = vpop.f32.mrf.mxu0
    %1222 = vmatprep.mubr.f32.mxu0 0.0
    %1223 = vmatmul.mubr.f32.gmra.mxu0 %v1105
    %v1224 = vpop.f32.mrf.mxu0
    %v1225 = vadd.f32 %v1127, %v1224
    %v1226 = vpop.f32.mrf.mxu0
    %1227 = vmatprep.mubr.f32.mxu0 0.0
    %1228 = vmatmul.mubr.f32.gmra.mxu0 %v1106
    %v1229 = vpop.f32.mrf.mxu0
    %v1230 = vadd.f32 %v1127, %v1229
    %v1231 = vpop.f32.mrf.mxu0
    %1232 = vdwg.mxu0
    %v1233 = vmax.f32 %v1195, 0.0
    %v1234 = vmax.f32 %v1200, 0.0
    %v1235 = vmax.f32 %v1205, 0.0
    %v1236 = vmax.f32 %v1210, 0.0
    %v1237 = vmax.f32 %v1215, 0.0
    %v1238 = vmax.f32 %v1220, 0.0
    %v1239 = vmax.f32 %v1225, 0.0
    %v1240 = vmax.f32 %v1230, 0.0
    %s1241 = scalar_lea.vmem [#allocation11], 128
    %v1242 = vld [vmem:[%s1241] sm:$0xff]
    %v1243 = vld [vmem:[%s1241 + $0x8] sm:$0xff]
    %v1244 = vld [vmem:[%s1241 + $0x10] sm:$0xff]
    %v1245 = vld [vmem:[%s1241 + $0x18] sm:$0xff]
    %v1246 = vld [vmem:[%s1241 + $0x20] sm:$0xff]
    %v1247 = vld [vmem:[%s1241 + $0x28] sm:$0xff]
    %v1248 = vld [vmem:[%s1241 + $0x30] sm:$0xff]
    %v1249 = vld [vmem:[%s1241 + $0x38] sm:$0xff]
    %v1250 = vld [vmem:[%s1241 + $0x40] sm:$0xff]
    %v1251 = vld [vmem:[%s1241 + $0x48] sm:$0xff]
    %v1252 = vld [vmem:[%s1241 + $0x50] sm:$0xff]
    %v1253 = vld [vmem:[%s1241 + $0x58] sm:$0xff]
    %v1254 = vld [vmem:[%s1241 + $0x60] sm:$0xff]
    %v1255 = vld [vmem:[%s1241 + $0x68] sm:$0xff]
    %v1256 = vld [vmem:[%s1241 + $0x70] sm:$0xff]
    %v1257 = vld [vmem:[%s1241 + $0x78] sm:$0xff]
    %v1258 = vld [vmem:[%s7 + $0x1] sm:$0x1]
    %v1259 = vlaneseq
    %v1260 = vshrl.u32 %v1259, 7
    %v1261 = vsub.s32 0, %v1260
    %v1262 = vrot.slane %v1258, %v1261
    %1263 = vmatprep.subr.mxu0 0.0
    %1264 = vmatpush1.msra.mxu0 %v1257
    %1265 = vmatprep.subr.mxu0 0.0
    %1266 = vmatpush1.msra.mxu0 %v1256
    %1267 = vmatprep.subr.mxu0 0.0
    %1268 = vmatpush1.msra.mxu0 %v1255
    %1269 = vmatprep.subr.mxu0 0.0
    %1270 = vmatpush1.msra.mxu0 %v1254
    %1271 = vmatprep.subr.mxu0 0.0
    %1272 = vmatpush1.msra.mxu0 %v1253
    %1273 = vmatprep.subr.mxu0 0.0
    %1274 = vmatpush1.msra.mxu0 %v1252
    %1275 = vmatprep.subr.mxu0 0.0
    %1276 = vmatpush1.msra.mxu0 %v1251
    %1277 = vmatprep.subr.mxu0 0.0
    %1278 = vmatpush1.msra.mxu0 %v1250
    %1279 = vmatprep.subr.mxu0 0.0
    %1280 = vmatpush1.msra.mxu0 %v1249
    %1281 = vmatprep.subr.mxu0 0.0
    %1282 = vmatpush1.msra.mxu0 %v1248
    %1283 = vmatprep.subr.mxu0 0.0
    %1284 = vmatpush1.msra.mxu0 %v1247
    %1285 = vmatprep.subr.mxu0 0.0
    %1286 = vmatpush1.msra.mxu0 %v1246
    %1287 = vmatprep.subr.mxu0 0.0
    %1288 = vmatpush1.msra.mxu0 %v1245
    %1289 = vmatprep.subr.mxu0 0.0
    %1290 = vmatpush1.msra.mxu0 %v1244
    %1291 = vmatprep.subr.mxu0 0.0
    %1292 = vmatpush1.msra.mxu0 %v1243
    %1293 = vmatprep.subr.mxu0 0.0
    %1294 = vmatpush1.msra.mxu0 %v1242
    %1295 = vmatprep.subr.mxu0 0.0
    %1296 = vmatpush2.msra.mxu0 0.0
    %1297 = vmatprep.subr.mxu0 0.0
    %1298 = vmatpush2.msra.mxu0 0.0
    %1299 = vmatprep.subr.mxu0 0.0
    %1300 = vmatpush2.msra.mxu0 0.0
    %1301 = vmatprep.subr.mxu0 0.0
    %1302 = vmatpush2.msra.mxu0 0.0
    %1303 = vmatprep.subr.mxu0 0.0
    %1304 = vmatpush2.msra.mxu0 0.0
    %1305 = vmatprep.subr.mxu0 0.0
    %1306 = vmatpush2.msra.mxu0 0.0
    %1307 = vmatprep.subr.mxu0 0.0
    %1308 = vmatpush2.msra.mxu0 0.0
    %1309 = vmatprep.subr.mxu0 0.0
    %1310 = vmatpush2.msra.mxu0 0.0
    %1311 = vmatprep.subr.mxu0 0.0
    %1312 = vmatpush2.msra.mxu0 0.0
    %1313 = vmatprep.subr.mxu0 0.0
    %1314 = vmatpush2.msra.mxu0 0.0
    %1315 = vmatprep.subr.mxu0 0.0
    %1316 = vmatpush2.msra.mxu0 0.0
    %1317 = vmatprep.subr.mxu0 0.0
    %1318 = vmatpush2.msra.mxu0 0.0
    %1319 = vmatprep.subr.mxu0 0.0
    %1320 = vmatpush2.msra.mxu0 0.0
    %1321 = vmatprep.subr.mxu0 0.0
    %1322 = vmatpush2.msra.mxu0 0.0
    %1323 = vmatprep.subr.mxu0 0.0
    %1324 = vmatpush2.msra.mxu0 0.0
    %1325 = vmatprep.subr.mxu0 0.0
    %1326 = vmatpush2.msra.mxu0 0.0
    %1327 = vmatprep.mubr.f32.mxu0 0.0
    %1328 = vmatmul.mubr.f32.gmra.mxu0 %v1233
    %v1329 = vpop.f32.mrf.mxu0
    %v1330 = vadd.f32 %v1262, %v1329
    %v1331 = vpop.f32.mrf.mxu0
    %1332 = vmatprep.mubr.f32.mxu0 0.0
    %1333 = vmatmul.mubr.f32.gmra.mxu0 %v1234
    %v1334 = vpop.f32.mrf.mxu0
    %v1335 = vadd.f32 %v1262, %v1334
    %v1336 = vpop.f32.mrf.mxu0
    %1337 = vmatprep.mubr.f32.mxu0 0.0
    %1338 = vmatmul.mubr.f32.gmra.mxu0 %v1235
    %v1339 = vpop.f32.mrf.mxu0
    %v1340 = vadd.f32 %v1262, %v1339
    %v1341 = vpop.f32.mrf.mxu0
    %1342 = vmatprep.mubr.f32.mxu0 0.0
    %1343 = vmatmul.mubr.f32.gmra.mxu0 %v1236
    %v1344 = vpop.f32.mrf.mxu0
    %v1345 = vadd.f32 %v1262, %v1344
    %v1346 = vpop.f32.mrf.mxu0
    %1347 = vmatprep.mubr.f32.mxu0 0.0
    %1348 = vmatmul.mubr.f32.gmra.mxu0 %v1237
    %v1349 = vpop.f32.mrf.mxu0
    %v1350 = vadd.f32 %v1262, %v1349
    %v1351 = vpop.f32.mrf.mxu0
    %1352 = vmatprep.mubr.f32.mxu0 0.0
    %1353 = vmatmul.mubr.f32.gmra.mxu0 %v1238
    %v1354 = vpop.f32.mrf.mxu0
    %v1355 = vadd.f32 %v1262, %v1354
    %v1356 = vpop.f32.mrf.mxu0
    %1357 = vmatprep.mubr.f32.mxu0 0.0
    %1358 = vmatmul.mubr.f32.gmra.mxu0 %v1239
    %v1359 = vpop.f32.mrf.mxu0
    %v1360 = vadd.f32 %v1262, %v1359
    %v1361 = vpop.f32.mrf.mxu0
    %1362 = vmatprep.mubr.f32.mxu0 0.0
    %1363 = vmatmul.mubr.f32.gmra.mxu0 %v1240
    %v1364 = vpop.f32.mrf.mxu0
    %v1365 = vadd.f32 %v1262, %v1364
    %v1366 = vpop.f32.mrf.mxu0
    %1367 = vdwg.mxu0
    %v1368 = vmax.f32 %v1330, 0.0
    %v1369 = vmax.f32 %v1335, 0.0
    %v1370 = vmax.f32 %v1340, 0.0
    %v1371 = vmax.f32 %v1345, 0.0
    %v1372 = vmax.f32 %v1350, 0.0
    %v1373 = vmax.f32 %v1355, 0.0
    %v1374 = vmax.f32 %v1360, 0.0
    %v1375 = vmax.f32 %v1365, 0.0
    %s1376 = scalar_lea.vmem [#allocation11], 256
    %v1377 = vld [vmem:[%s1376] sm:$0xff]
    %v1378 = vld [vmem:[%s1376 + $0x8] sm:$0xff]
    %v1379 = vld [vmem:[%s1376 + $0x10] sm:$0xff]
    %v1380 = vld [vmem:[%s1376 + $0x18] sm:$0xff]
    %v1381 = vld [vmem:[%s1376 + $0x20] sm:$0xff]
    %v1382 = vld [vmem:[%s1376 + $0x28] sm:$0xff]
    %v1383 = vld [vmem:[%s1376 + $0x30] sm:$0xff]
    %v1384 = vld [vmem:[%s1376 + $0x38] sm:$0xff]
    %v1385 = vld [vmem:[%s1376 + $0x40] sm:$0xff]
    %v1386 = vld [vmem:[%s1376 + $0x48] sm:$0xff]
    %v1387 = vld [vmem:[%s1376 + $0x50] sm:$0xff]
    %v1388 = vld [vmem:[%s1376 + $0x58] sm:$0xff]
    %v1389 = vld [vmem:[%s1376 + $0x60] sm:$0xff]
    %v1390 = vld [vmem:[%s1376 + $0x68] sm:$0xff]
    %v1391 = vld [vmem:[%s1376 + $0x70] sm:$0xff]
    %v1392 = vld [vmem:[%s1376 + $0x78] sm:$0xff]
    %v1393 = vld [vmem:[%s7 + $0x2] sm:$0x1]
    %v1394 = vlaneseq
    %v1395 = vshrl.u32 %v1394, 7
    %v1396 = vsub.s32 0, %v1395
    %v1397 = vrot.slane %v1393, %v1396
    %1398 = vmatprep.subr.mxu0 0.0
    %1399 = vmatpush1.msra.mxu0 %v1392
    %1400 = vmatprep.subr.mxu0 0.0
    %1401 = vmatpush1.msra.mxu0 %v1391
    %1402 = vmatprep.subr.mxu0 0.0
    %1403 = vmatpush1.msra.mxu0 %v1390
    %1404 = vmatprep.subr.mxu0 0.0
    %1405 = vmatpush1.msra.mxu0 %v1389
    %1406 = vmatprep.subr.mxu0 0.0
    %1407 = vmatpush1.msra.mxu0 %v1388
    %1408 = vmatprep.subr.mxu0 0.0
    %1409 = vmatpush1.msra.mxu0 %v1387
    %1410 = vmatprep.subr.mxu0 0.0
    %1411 = vmatpush1.msra.mxu0 %v1386
    %1412 = vmatprep.subr.mxu0 0.0
    %1413 = vmatpush1.msra.mxu0 %v1385
    %1414 = vmatprep.subr.mxu0 0.0
    %1415 = vmatpush1.msra.mxu0 %v1384
    %1416 = vmatprep.subr.mxu0 0.0
    %1417 = vmatpush1.msra.mxu0 %v1383
    %1418 = vmatprep.subr.mxu0 0.0
    %1419 = vmatpush1.msra.mxu0 %v1382
    %1420 = vmatprep.subr.mxu0 0.0
    %1421 = vmatpush1.msra.mxu0 %v1381
    %1422 = vmatprep.subr.mxu0 0.0
    %1423 = vmatpush1.msra.mxu0 %v1380
    %1424 = vmatprep.subr.mxu0 0.0
    %1425 = vmatpush1.msra.mxu0 %v1379
    %1426 = vmatprep.subr.mxu0 0.0
    %1427 = vmatpush1.msra.mxu0 %v1378
    %1428 = vmatprep.subr.mxu0 0.0
    %1429 = vmatpush1.msra.mxu0 %v1377
    %1430 = vmatprep.subr.mxu0 0.0
    %1431 = vmatpush2.msra.mxu0 0.0
    %1432 = vmatprep.subr.mxu0 0.0
    %1433 = vmatpush2.msra.mxu0 0.0
    %1434 = vmatprep.subr.mxu0 0.0
    %1435 = vmatpush2.msra.mxu0 0.0
    %1436 = vmatprep.subr.mxu0 0.0
    %1437 = vmatpush2.msra.mxu0 0.0
    %1438 = vmatprep.subr.mxu0 0.0
    %1439 = vmatpush2.msra.mxu0 0.0
    %1440 = vmatprep.subr.mxu0 0.0
    %1441 = vmatpush2.msra.mxu0 0.0
    %1442 = vmatprep.subr.mxu0 0.0
    %1443 = vmatpush2.msra.mxu0 0.0
    %1444 = vmatprep.subr.mxu0 0.0
    %1445 = vmatpush2.msra.mxu0 0.0
    %1446 = vmatprep.subr.mxu0 0.0
    %1447 = vmatpush2.msra.mxu0 0.0
    %1448 = vmatprep.subr.mxu0 0.0
    %1449 = vmatpush2.msra.mxu0 0.0
    %1450 = vmatprep.subr.mxu0 0.0
    %1451 = vmatpush2.msra.mxu0 0.0
    %1452 = vmatprep.subr.mxu0 0.0
    %1453 = vmatpush2.msra.mxu0 0.0
    %1454 = vmatprep.subr.mxu0 0.0
    %1455 = vmatpush2.msra.mxu0 0.0
    %1456 = vmatprep.subr.mxu0 0.0
    %1457 = vmatpush2.msra.mxu0 0.0
    %1458 = vmatprep.subr.mxu0 0.0
    %1459 = vmatpush2.msra.mxu0 0.0
    %1460 = vmatprep.subr.mxu0 0.0
    %1461 = vmatpush2.msra.mxu0 0.0
    %1462 = vmatprep.mubr.f32.mxu0 0.0
    %1463 = vmatmul.mubr.f32.gmra.mxu0 %v1368
    %v1464 = vpop.f32.mrf.mxu0
    %v1465 = vadd.f32 %v1397, %v1464
    %v1466 = vpop.f32.mrf.mxu0
    %1467 = vmatprep.mubr.f32.mxu0 0.0
    %1468 = vmatmul.mubr.f32.gmra.mxu0 %v1369
    %v1469 = vpop.f32.mrf.mxu0
    %v1470 = vadd.f32 %v1397, %v1469
    %v1471 = vpop.f32.mrf.mxu0
    %1472 = vmatprep.mubr.f32.mxu0 0.0
    %1473 = vmatmul.mubr.f32.gmra.mxu0 %v1370
    %v1474 = vpop.f32.mrf.mxu0
    %v1475 = vadd.f32 %v1397, %v1474
    %v1476 = vpop.f32.mrf.mxu0
    %1477 = vmatprep.mubr.f32.mxu0 0.0
    %1478 = vmatmul.mubr.f32.gmra.mxu0 %v1371
    %v1479 = vpop.f32.mrf.mxu0
    %v1480 = vadd.f32 %v1397, %v1479
    %v1481 = vpop.f32.mrf.mxu0
    %1482 = vmatprep.mubr.f32.mxu0 0.0
    %1483 = vmatmul.mubr.f32.gmra.mxu0 %v1372
    %v1484 = vpop.f32.mrf.mxu0
    %v1485 = vadd.f32 %v1397, %v1484
    %v1486 = vpop.f32.mrf.mxu0
    %1487 = vmatprep.mubr.f32.mxu0 0.0
    %1488 = vmatmul.mubr.f32.gmra.mxu0 %v1373
    %v1489 = vpop.f32.mrf.mxu0
    %v1490 = vadd.f32 %v1397, %v1489
    %v1491 = vpop.f32.mrf.mxu0
    %1492 = vmatprep.mubr.f32.mxu0 0.0
    %1493 = vmatmul.mubr.f32.gmra.mxu0 %v1374
    %v1494 = vpop.f32.mrf.mxu0
    %v1495 = vadd.f32 %v1397, %v1494
    %v1496 = vpop.f32.mrf.mxu0
    %1497 = vmatprep.mubr.f32.mxu0 0.0
    %1498 = vmatmul.mubr.f32.gmra.mxu0 %v1375
    %v1499 = vpop.f32.mrf.mxu0
    %v1500 = vadd.f32 %v1397, %v1499
    %v1501 = vpop.f32.mrf.mxu0
    %1502 = vdwg.mxu0
    %v1503 = vmax.f32 %v1465, 0.0
    %v1504 = vmax.f32 %v1470, 0.0
    %v1505 = vmax.f32 %v1475, 0.0
    %v1506 = vmax.f32 %v1480, 0.0
    %v1507 = vmax.f32 %v1485, 0.0
    %v1508 = vmax.f32 %v1490, 0.0
    %v1509 = vmax.f32 %v1495, 0.0
    %v1510 = vmax.f32 %v1500, 0.0
    %v1511 = vld [vmem:[#allocation12] sm:$0xff]
    %v1512 = vld [vmem:[#allocation12 + $0x8] sm:$0xff]
    %v1513 = vld [vmem:[#allocation12 + $0x10] sm:$0xff]
    %v1514 = vld [vmem:[#allocation12 + $0x18] sm:$0xff]
    %v1515 = vld [vmem:[#allocation12 + $0x20] sm:$0xff]
    %v1516 = vld [vmem:[#allocation12 + $0x28] sm:$0xff]
    %v1517 = vld [vmem:[#allocation12 + $0x30] sm:$0xff]
    %v1518 = vld [vmem:[#allocation12 + $0x38] sm:$0xff]
    %v1519 = vld [vmem:[#allocation12 + $0x40] sm:$0xff]
    %v1520 = vld [vmem:[#allocation12 + $0x48] sm:$0xff]
    %v1521 = vld [vmem:[#allocation12 + $0x50] sm:$0xff]
    %v1522 = vld [vmem:[#allocation12 + $0x58] sm:$0xff]
    %v1523 = vld [vmem:[#allocation12 + $0x60] sm:$0xff]
    %v1524 = vld [vmem:[#allocation12 + $0x68] sm:$0xff]
    %v1525 = vld [vmem:[#allocation12 + $0x70] sm:$0xff]
    %v1526 = vld [vmem:[#allocation12 + $0x78] sm:$0xff]
    %v1527 = vld [vmem:[%s7 + $0x3] sm:$0x1]
    %v1528 = vlaneseq
    %v1529 = vshrl.u32 %v1528, 7
    %v1530 = vsub.s32 0, %v1529
    %v1531 = vrot.slane %v1527, %v1530
    %1532 = vmatprep.subr.mxu0 0.0
    %1533 = vmatpush1.msra.mxu0 %v1526
    %1534 = vmatprep.subr.mxu0 0.0
    %1535 = vmatpush1.msra.mxu0 %v1525
    %1536 = vmatprep.subr.mxu0 0.0
    %1537 = vmatpush1.msra.mxu0 %v1524
    %1538 = vmatprep.subr.mxu0 0.0
    %1539 = vmatpush1.msra.mxu0 %v1523
    %1540 = vmatprep.subr.mxu0 0.0
    %1541 = vmatpush1.msra.mxu0 %v1522
    %1542 = vmatprep.subr.mxu0 0.0
    %1543 = vmatpush1.msra.mxu0 %v1521
    %1544 = vmatprep.subr.mxu0 0.0
    %1545 = vmatpush1.msra.mxu0 %v1520
    %1546 = vmatprep.subr.mxu0 0.0
    %1547 = vmatpush1.msra.mxu0 %v1519
    %1548 = vmatprep.subr.mxu0 0.0
    %1549 = vmatpush1.msra.mxu0 %v1518
    %1550 = vmatprep.subr.mxu0 0.0
    %1551 = vmatpush1.msra.mxu0 %v1517
    %1552 = vmatprep.subr.mxu0 0.0
    %1553 = vmatpush1.msra.mxu0 %v1516
    %1554 = vmatprep.subr.mxu0 0.0
    %1555 = vmatpush1.msra.mxu0 %v1515
    %1556 = vmatprep.subr.mxu0 0.0
    %1557 = vmatpush1.msra.mxu0 %v1514
    %1558 = vmatprep.subr.mxu0 0.0
    %1559 = vmatpush1.msra.mxu0 %v1513
    %1560 = vmatprep.subr.mxu0 0.0
    %1561 = vmatpush1.msra.mxu0 %v1512
    %1562 = vmatprep.subr.mxu0 0.0
    %1563 = vmatpush1.msra.mxu0 %v1511
    %1564 = vmatprep.subr.mxu0 0.0
    %1565 = vmatpush2.msra.mxu0 0.0
    %1566 = vmatprep.subr.mxu0 0.0
    %1567 = vmatpush2.msra.mxu0 0.0
    %1568 = vmatprep.subr.mxu0 0.0
    %1569 = vmatpush2.msra.mxu0 0.0
    %1570 = vmatprep.subr.mxu0 0.0
    %1571 = vmatpush2.msra.mxu0 0.0
    %1572 = vmatprep.subr.mxu0 0.0
    %1573 = vmatpush2.msra.mxu0 0.0
    %1574 = vmatprep.subr.mxu0 0.0
    %1575 = vmatpush2.msra.mxu0 0.0
    %1576 = vmatprep.subr.mxu0 0.0
    %1577 = vmatpush2.msra.mxu0 0.0
    %1578 = vmatprep.subr.mxu0 0.0
    %1579 = vmatpush2.msra.mxu0 0.0
    %1580 = vmatprep.subr.mxu0 0.0
    %1581 = vmatpush2.msra.mxu0 0.0
    %1582 = vmatprep.subr.mxu0 0.0
    %1583 = vmatpush2.msra.mxu0 0.0
    %1584 = vmatprep.subr.mxu0 0.0
    %1585 = vmatpush2.msra.mxu0 0.0
    %1586 = vmatprep.subr.mxu0 0.0
    %1587 = vmatpush2.msra.mxu0 0.0
    %1588 = vmatprep.subr.mxu0 0.0
    %1589 = vmatpush2.msra.mxu0 0.0
    %1590 = vmatprep.subr.mxu0 0.0
    %1591 = vmatpush2.msra.mxu0 0.0
    %1592 = vmatprep.subr.mxu0 0.0
    %1593 = vmatpush2.msra.mxu0 0.0
    %1594 = vmatprep.subr.mxu0 0.0
    %1595 = vmatpush2.msra.mxu0 0.0
    %1596 = vmatprep.mubr.f32.mxu0 0.0
    %1597 = vmatmul.mubr.f32.gmra.mxu0 %v1503
    %v1598 = vpop.f32.mrf.mxu0
    %v1599 = vadd.f32 %v1531, %v1598
    %v1600 = vpop.f32.mrf.mxu0
    %1601 = vmatprep.mubr.f32.mxu0 0.0
    %1602 = vmatmul.mubr.f32.gmra.mxu0 %v1504
    %v1603 = vpop.f32.mrf.mxu0
    %v1604 = vadd.f32 %v1531, %v1603
    %v1605 = vpop.f32.mrf.mxu0
    %1606 = vmatprep.mubr.f32.mxu0 0.0
    %1607 = vmatmul.mubr.f32.gmra.mxu0 %v1505
    %v1608 = vpop.f32.mrf.mxu0
    %v1609 = vadd.f32 %v1531, %v1608
    %v1610 = vpop.f32.mrf.mxu0
    %1611 = vmatprep.mubr.f32.mxu0 0.0
    %1612 = vmatmul.mubr.f32.gmra.mxu0 %v1506
    %v1613 = vpop.f32.mrf.mxu0
    %v1614 = vadd.f32 %v1531, %v1613
    %v1615 = vpop.f32.mrf.mxu0
    %1616 = vmatprep.mubr.f32.mxu0 0.0
    %1617 = vmatmul.mubr.f32.gmra.mxu0 %v1507
    %v1618 = vpop.f32.mrf.mxu0
    %v1619 = vadd.f32 %v1531, %v1618
    %v1620 = vpop.f32.mrf.mxu0
    %1621 = vmatprep.mubr.f32.mxu0 0.0
    %1622 = vmatmul.mubr.f32.gmra.mxu0 %v1508
    %v1623 = vpop.f32.mrf.mxu0
    %v1624 = vadd.f32 %v1531, %v1623
    %v1625 = vpop.f32.mrf.mxu0
    %1626 = vmatprep.mubr.f32.mxu0 0.0
    %1627 = vmatmul.mubr.f32.gmra.mxu0 %v1509
    %v1628 = vpop.f32.mrf.mxu0
    %v1629 = vadd.f32 %v1531, %v1628
    %v1630 = vpop.f32.mrf.mxu0
    %1631 = vmatprep.mubr.f32.mxu0 0.0
    %1632 = vmatmul.mubr.f32.gmra.mxu0 %v1510
    %v1633 = vpop.f32.mrf.mxu0
    %v1634 = vadd.f32 %v1531, %v1633
    %v1635 = vpop.f32.mrf.mxu0
    %1636 = vdwg.mxu0
    %v1637 = vtanh.pop %v1599
    %v1638 = vtanh.pop %v1604
    %v1639 = vtanh.pop %v1609
    %v1640 = vtanh.pop %v1614
    %v1641 = vtanh.pop %v1619
    %v1642 = vtanh.pop %v1624
    %v1643 = vtanh.pop %v1629
    %v1644 = vtanh.pop %v1634
    %v1645 = vmul.f32 %v1637, 20.0
    %v1646 = vmul.f32 %v1638, 20.0
    %v1647 = vmul.f32 %v1639, 20.0
    %v1648 = vmul.f32 %v1640, 20.0
    %v1649 = vmul.f32 %v1641, 20.0
    %v1650 = vmul.f32 %v1642, 20.0
    %v1651 = vmul.f32 %v1643, 20.0
    %v1652 = vmul.f32 %v1644, 20.0
    %1653 = vst [vmem:[#allocation14] sm:$0xff] %v1645
    %1654 = vst [vmem:[#allocation14 + $0x8] sm:$0xff] %v1646
    %1655 = vst [vmem:[#allocation14 + $0x10] sm:$0xff] %v1647
    %1656 = vst [vmem:[#allocation14 + $0x18] sm:$0xff] %v1648
    %1657 = vst [vmem:[#allocation14 + $0x20] sm:$0xff] %v1649
    %1658 = vst [vmem:[#allocation14 + $0x28] sm:$0xff] %v1650
    %1659 = vst [vmem:[#allocation14 + $0x30] sm:$0xff] %v1651
    %1660 = vst [vmem:[#allocation14 + $0x38] sm:$0xff] %v1652
    // Predicated region
    $region50: #{tpu_custom_call.1} parent=1 // pred_check
      _
    $region51: #{tpu_custom_call.1} parent=1 // pred_check_branch
      %1662 = sbr.rel (0) target = $region53
    $region52: #{tpu_custom_call.1} parent=1 // pred_region
      %s1664 = ssub.s32 1024, 1024
      %1665 = vsyncadd [#allocation8], %s1664
      %s1666 = sshll.u32 [#allocation14], 4
      %s1667 = int_to_ptr.vmem [resolvable:$true] %s1666
      %1672 = dma.vmem_to_hbm [thread:$0]  %s1667, 1024, %s8, [#allocation8], 128, 128, 8
    $region53: #{tpu_custom_call.1} parent=1 // pred_fallthru
      _
    // Predicated region
    $region54: #{tpu_custom_call.1} parent=1 // pred_check
      _
    $region55: #{tpu_custom_call.1} parent=1 // pred_check_branch
      %1674 = sbr.rel (0) target = $region57
    $region56: #{tpu_custom_call.1} parent=1 // pred_region
      %s1676 = ssub.s32 128, 128
      %1677 = vsyncadd [#allocation16], %s1676
      %s1679 = sshll.u32 [#allocation15], 4
      %s1680 = int_to_ptr.vmem [resolvable:$true] %s1679
      %1682 = dma.vmem_to_hbm [thread:$0]  %s1680, 128, %s9, [#allocation16]
    $region57: #{tpu_custom_call.1} parent=1 // pred_fallthru
      _
    // Predicated region
    $region58: #{tpu_custom_call.1} parent=1 // pred_check
      _
    $region59: #{tpu_custom_call.1} parent=1 // pred_check_branch
      %1684 = sbr.rel (0) target = $region61
    $region60: #{tpu_custom_call.1} parent=1 // pred_region
      %1685 = dma.done [#allocation8], 1024
    $region61: #{tpu_custom_call.1} parent=1 // pred_fallthru
      _
    // Predicated region
    $region62: #{tpu_custom_call.1} parent=1 // pred_check
      _
    $region63: #{tpu_custom_call.1} parent=1 // pred_check_branch
      %1687 = sbr.rel (0) target = $region65
    $region64: #{tpu_custom_call.1} parent=1 // pred_region
      %1688 = dma.done [#allocation16], 128
    $region65: #{tpu_custom_call.1} parent=1 // pred_fallthru
      _
    %1689 = vsyncpa [#allocation7], 1
    %1690 = vsyncpa [#allocation10], 1
    %1691 = vsyncpa [#allocation13], 1
    %1692 = vsyncpa [#allocation8], 1
    %1693 = vsyncpa [#allocation16], 1

</llo_original>
